<compile_context>
chip_gen: v7x
topology: tpu7x:2x2x1
jax: 0.10.0
libtpu: 0.0.40
codegen_flags: <defaults>
</compile_context>

<pallas_src>
from functools import partial

import jax
import jax.numpy as jnp
from jax.experimental import pallas as pl
from jax.experimental.pallas import tpu as pltpu

USE_BF16 = True  # bf16 MXU operands with f32 accumulation (v5e/v6e/v7x native)


def _round_up(x, m):
    return ((x + m - 1) // m) * m


# ----------------------------------------------------------------------------
# Pallas kernel: fused CLIP forward (encoders + projection heads + L2 norm +
# both logits matrices), single invocation, everything resident in VMEM.
# ----------------------------------------------------------------------------
def clip_forward_kernel(
    img_ref,        # (Bp, img_in_p)        flattened NCHW image (compute dtype)
    txt_ref,        # (Bp, txt_in_p)        text features        (compute dtype)
    wi_enc_ref,     # (img_in_p, img_emb_p) image encoder W, pre-transposed
    bi_enc_ref,     # (1, img_emb_p)        image encoder bias (f32)
    wt_enc_ref,     # (txt_in_p, txt_emb_p) text encoder W, pre-transposed
    bt_enc_ref,     # (1, txt_emb_p)        text encoder bias (f32)
    wi_proj_ref,    # (img_emb_p, joint_p)  img_head.projection W, pre-transposed
    bi_proj_ref,    # (1, joint_p)          img_head.projection bias (f32)
    wt_proj_ref,    # (txt_emb_p, joint_p)  txt_head.projection W, pre-transposed
    bt_proj_ref,    # (1, joint_p)          txt_head.projection bias (f32)
    lpi_ref,        # (Bp, Bp)              logits_per_image (f32)
    lpt_ref,        # (Bp, Bp)              logits_per_text  (f32)
    img_emb_ref,    # (Bp, joint_p)         normalized image embeddings (f32)
    txt_emb_ref,    # (Bp, joint_p)         normalized text embeddings  (f32)
    *,
    transpose_logits: bool,
):
    f32 = jnp.float32
    cdt = wi_proj_ref.dtype                   # matmul compute dtype (bf16 or f32)
    eps = jnp.float32(1e-12)                  # guards zero rows in the L2 norm
    contract_last = (((1,), (1,)), ((), ()))  # A @ B.T without an XLU transpose

    # ---- image branch: encoder Linear -> ProjectionHead -> L2 normalize ----
    img_feat = (
        jnp.dot(img_ref[...], wi_enc_ref[...], preferred_element_type=f32)
        + bi_enc_ref[...]
    )
    img_emb = (
        jnp.dot(img_feat.astype(cdt), wi_proj_ref[...], preferred_element_type=f32)
        + bi_proj_ref[...]
    )
    img_emb = img_emb * jax.lax.rsqrt(
        jnp.sum(img_emb * img_emb, axis=-1, keepdims=True) + eps
    )

    # ---- text branch: encoder Linear -> ProjectionHead -> L2 normalize ----
    txt_feat = (
        jnp.dot(txt_ref[...], wt_enc_ref[...], preferred_element_type=f32)
        + bt_enc_ref[...]
    )
    txt_emb = (
        jnp.dot(txt_feat.astype(cdt), wt_proj_ref[...], preferred_element_type=f32)
        + bt_proj_ref[...]
    )
    txt_emb = txt_emb * jax.lax.rsqrt(
        jnp.sum(txt_emb * txt_emb, axis=-1, keepdims=True) + eps
    )

    # ---- logits: img_embed @ txt_embed.T, in f32 (accuracy: the logits
    #      contraction is tiny, so do not re-quantize the normalized embeddings).
    #      logit_scale is NOT applied in the reference forward(). ----
    lpi = jax.lax.dot_general(
        img_emb, txt_emb, contract_last, preferred_element_type=f32
    )
    lpi_ref[...] = lpi
    if transpose_logits:
        # Large batch: lpt == lpi.T exactly; skip the redundant MXU contraction.
        lpt_ref[...] = lpi.T
    else:
        # Tiny batch: a second small dot is cheaper than a relayout.
        lpt_ref[...] = jax.lax.dot_general(
            txt_emb, img_emb, contract_last, preferred_element_type=f32
        )
    img_emb_ref[...] = img_emb
    txt_emb_ref[...] = txt_emb


# ----------------------------------------------------------------------------
# One-time parameter packing: transpose Linear weights to (in, out), zero-pad
# every feature dim to a lane multiple (128), cast matmul operands to the
# compute dtype.  Zero padding is exact: padded feature columns stay zero
# through Linear layers and contribute nothing to the L2 norm or the logits.
# ----------------------------------------------------------------------------
def pack_params(p, compute_dtype=jnp.bfloat16):
    joint, img_emb = p["wi_proj"].shape
    _, txt_emb = p["wt_proj"].shape
    _, img_in = p["wi_enc"].shape
    _, txt_in = p["wt_enc"].shape

    img_in_p = _round_up(img_in, 128)
    txt_in_p = _round_up(txt_in, 128)
    img_emb_p = _round_up(img_emb, 128)
    txt_emb_p = _round_up(txt_emb, 128)
    joint_p = _round_up(joint, 128)

    def w_t(w, in_p, out_p):  # (out, in) -> padded (in_p, out_p), compute dtype
        wt = w.T
        wt = jnp.pad(wt, ((0, in_p - wt.shape[0]), (0, out_p - wt.shape[1])))
        return wt.astype(compute_dtype)

    def b_p(b, out_p):  # (1, out) -> padded (1, out_p), f32 (added post-accum)
        return jnp.pad(b, ((0, 0), (0, out_p - b.shape[1]))).astype(jnp.float32)

    return {
        "wi_enc_t": w_t(p["wi_enc"], img_in_p, img_emb_p),
        "bi_enc": b_p(p["bi_enc"], img_emb_p),
        "wt_enc_t": w_t(p["wt_enc"], txt_in_p, txt_emb_p),
        "bt_enc": b_p(p["bt_enc"], txt_emb_p),
        "wi_proj_t": w_t(p["wi_proj"], img_emb_p, joint_p),
        "bi_proj": b_p(p["bi_proj"], joint_p),
        "wt_proj_t": w_t(p["wt_proj"], txt_emb_p, joint_p),
        "bt_proj": b_p(p["bt_proj"], joint_p),
        "dims": dict(
            img_in=img_in, txt_in=txt_in, joint=joint,
            img_in_p=img_in_p, txt_in_p=txt_in_p,
            img_emb_p=img_emb_p, txt_emb_p=txt_emb_p, joint_p=joint_p,
            compute_dtype=compute_dtype,
        ),
    }


# ----------------------------------------------------------------------------
# Wrapper
# ----------------------------------------------------------------------------
def clip_forward(img_nchw, txt, packed):
    """Forward pass of CLIPModel.

    Returns (logits_per_image, logits_per_text, img_embed, txt_embed).
    """
    d = packed["dims"]
    cdt = d["compute_dtype"]

    # Pad batch to the compute dtype's sublane pack: 8 rows/vreg for f32,
    # 16 for bf16, 32 for int8/fp8 -> every activation tile is vreg-dense.
    sublane_pack = 8 * (4 // jnp.dtype(cdt).itemsize)
    B = img_nchw.shape[0]
    B_pad = max(sublane_pack, _round_up(B, sublane_pack))

    img_flat = img_nchw.reshape(B, -1).astype(jnp.float32)   # NCHW flatten (glue)
    img_flat = jnp.pad(
        img_flat, ((0, B_pad - B), (0, d["img_in_p"] - d["img_in"]))
    ).astype(cdt)
    txt_pad = jnp.pad(
        txt.astype(jnp.float32), ((0, B_pad - B), (0, d["txt_in_p"] - d["txt_in"]))
    ).astype(cdt)

    vmem = pl.BlockSpec(memory_space=pltpu.MemorySpace.VMEM)
    joint_p = d["joint_p"]

    out_shapes = (
        jax.ShapeDtypeStruct((B_pad, B_pad), jnp.float32),    # logits_per_image
        jax.ShapeDtypeStruct((B_pad, B_pad), jnp.float32),    # logits_per_text
        jax.ShapeDtypeStruct((B_pad, joint_p), jnp.float32),  # img_embed
        jax.ShapeDtypeStruct((B_pad, joint_p), jnp.float32),  # txt_embed
    )

    # At large batch, produce logits_per_text as lpi.T instead of a second
    # O(B^2 * joint) MXU contraction.
    transpose_logits = B_pad >= 128
    kernel = partial(clip_forward_kernel, transpose_logits=transpose_logits)

    inputs = (
        img_flat,
        txt_pad,
        packed["wi_enc_t"], packed["bi_enc"],
        packed["wt_enc_t"], packed["bt_enc"],
        packed["wi_proj_t"], packed["bi_proj"],
        packed["wt_proj_t"], packed["bt_proj"],
    )

    # Advisory cost estimate for XLA scheduling around the custom call.
    n_logit_dots = 1 if transpose_logits else 2
    flops = 2 * B_pad * (
        d["img_in_p"] * d["img_emb_p"]
        + d["img_emb_p"] * joint_p
        + d["txt_in_p"] * d["txt_emb_p"]
        + d["txt_emb_p"] * joint_p
        + n_logit_dots * B_pad * joint_p
    )
    bytes_accessed = sum(int(a.size) * a.dtype.itemsize for a in inputs) + sum(
        int(jnp.prod(jnp.array(s.shape))) * jnp.dtype(s.dtype).itemsize
        for s in out_shapes
    )
    cost = pl.CostEstimate(
        flops=int(flops), transcendentals=2 * B_pad, bytes_accessed=int(bytes_accessed)
    )

    # Explicit scoped-VMEM budget: v5e defaults to 16 MiB, v6e/v7x to 32 MiB;
    # keep <= 64 MiB so the same budget is safe on v7x's 64 MiB physical VMEM.
    vmem_needed = 2 * bytes_accessed  # everything resident + headroom
    vmem_limit = int(min(64 << 20, max(32 << 20, vmem_needed)))

    lpi, lpt, img_e, txt_e = pl.pallas_call(
        kernel,
        out_shape=out_shapes,
        in_specs=[vmem] * 10,
        out_specs=(vmem, vmem, vmem, vmem),
        compiler_params=pltpu.CompilerParams(vmem_limit_bytes=vmem_limit),
        cost_estimate=cost,
    )(*inputs)

    joint = d["joint"]
    return (
        lpi[:B, :B],
        lpt[:B, :B],
        img_e[:B, :joint],
        txt_e[:B, :joint],
    )


# ----------------------------------------------------------------------------
# Deterministic parameter init (synthetic; shapes follow the module __init__,
# PyTorch (out, in) weight convention).
# ----------------------------------------------------------------------------
def init_params(key, img_in, txt_in, img_emb_dim, txt_emb_dim, joint_emb_dim):
    ks = jax.random.split(key, 8)

    def linear(kw, kb, out_dim, in_dim):
        bound = 1.0 / jnp.sqrt(in_dim)
        w = jax.random.uniform(kw, (out_dim, in_dim), jnp.float32, -bound, bound)
        b = jax.random.uniform(kb, (1, out_dim), jnp.float32, -bound, bound)
        return w, b

    wi_enc, bi_enc = linear(ks[0], ks[1], img_emb_dim, img_in)
    wt_enc, bt_enc = linear(ks[2], ks[3], txt_emb_dim, txt_in)
    wi_proj, bi_proj = linear(ks[4], ks[5], joint_emb_dim, img_emb_dim)
    wt_proj, bt_proj = linear(ks[6], ks[7], joint_emb_dim, txt_emb_dim)

    return {
        "wi_enc": wi_enc, "bi_enc": bi_enc,
        "wt_enc": wt_enc, "bt_enc": bt_enc,
        "wi_proj": wi_proj, "bi_proj": bi_proj,
        "wt_proj": wt_proj, "bt_proj": bt_proj,
        # unused in forward(), but part of the module's parameters:
        "logit_scale": jnp.array(jnp.log(1.0 / 0.01), jnp.float32),
        "logit_scale2": jnp.array(jnp.log(1.0 / 0.07), jnp.float32),
    }


# ----------------------------------------------------------------------------
# Pure-JAX f32 reference for a correctness spot-check
# ----------------------------------------------------------------------------
def clip_forward_ref(img_nchw, txt, p):
    B = img_nchw.shape[0]
    x = img_nchw.reshape(B, -1)
    img_feat = x @ p["wi_enc"].T + p["bi_enc"]
    img_emb = img_feat @ p["wi_proj"].T + p["bi_proj"]
    img_emb = img_emb / jnp.linalg.norm(img_emb, axis=-1, keepdims=True)
    txt_feat = txt @ p["wt_enc"].T + p["bt_enc"]
    txt_emb = txt_feat @ p["wt_proj"].T + p["bt_proj"]
    txt_emb = txt_emb / jnp.linalg.norm(txt_emb, axis=-1, keepdims=True)
    lpi = img_emb @ txt_emb.T
    return lpi, lpi.T, img_emb, txt_emb


if __name__ == "__main__":
    # Small shapes consistent with the module's forward().
    B, C, H, W = 2, 4, 16, 16          # image: NCHW
    TXT_IN = 32                        # text feature dim fed to txt_encoder
    IMG_EMB, TXT_EMB, JOINT = 64, 48, 256

    key = jax.random.PRNGKey(0)
    k_img, k_txt, k_par = jax.random.split(key, 3)

    img = jax.random.normal(k_img, (B, C, H, W), jnp.float32)
    txt = jax.random.normal(k_txt, (B, TXT_IN), jnp.float32)
    params = init_params(k_par, C * H * W, TXT_IN, IMG_EMB, TXT_EMB, JOINT)

    compute_dtype = jnp.bfloat16 if USE_BF16 else jnp.float32
    packed = pack_params(params, compute_dtype=compute_dtype)

    outs = clip_forward(img, txt, packed)
    outs = jax.block_until_ready(outs)

    refs = clip_forward_ref(img, txt, params)
    tol = 5e-2 if USE_BF16 else 1e-4   # bf16 MXU operands need looser tolerance
    for o, r in zip(outs, refs):
        assert o.shape == r.shape, f"shape mismatch {o.shape} vs {r.shape}"
        assert jnp.allclose(o, r, atol=tol, rtol=tol), "mismatch vs reference"

    print("KERNEL_OK")
</pallas_src>

<mosaic_0001>
module attributes {stable_mosaic.version = 11 : i64} {
  func.func @clip_forward_kernel(%arg0: memref<16x1024xbf16, #tpu.memory_space<vmem>>, %arg1: memref<16x128xbf16, #tpu.memory_space<vmem>>, %arg2: memref<1024x128xbf16, #tpu.memory_space<vmem>>, %arg3: memref<1x128xf32, #tpu.memory_space<vmem>>, %arg4: memref<128x128xbf16, #tpu.memory_space<vmem>>, %arg5: memref<1x128xf32, #tpu.memory_space<vmem>>, %arg6: memref<128x256xbf16, #tpu.memory_space<vmem>>, %arg7: memref<1x256xf32, #tpu.memory_space<vmem>>, %arg8: memref<128x256xbf16, #tpu.memory_space<vmem>>, %arg9: memref<1x256xf32, #tpu.memory_space<vmem>>, %arg10: memref<16x16xf32, #tpu.memory_space<vmem>>, %arg11: memref<16x16xf32, #tpu.memory_space<vmem>>, %arg12: memref<16x256xf32, #tpu.memory_space<vmem>>, %arg13: memref<16x256xf32, #tpu.memory_space<vmem>>) attributes {dimension_semantics = [], scalar_prefetch = 0 : i64, scratch_operands = 0 : i64, tpu.core_type = #tpu.core_type<tc>} {
    %c0 = arith.constant 0 : index
    %c0_0 = arith.constant 0 : index
    %0 = vector.load %arg0[%c0, %c0_0] : memref<16x1024xbf16, #tpu.memory_space<vmem>>, vector<16x1024xbf16>
    %c0_1 = arith.constant 0 : index
    %c0_2 = arith.constant 0 : index
    %1 = vector.load %arg2[%c0_1, %c0_2] : memref<1024x128xbf16, #tpu.memory_space<vmem>>, vector<1024x128xbf16>
    %cst = arith.constant dense<0.000000e+00> : vector<16x128xf32>
    %2 = tpu.matmul %0, %1, %cst {dimension_numbers = #tpu.dot_dimension_numbers<[1], [0], [0], [1], [0, 0, 1, 1], [], []>} : vector<16x1024xbf16>, vector<1024x128xbf16>, vector<16x128xf32> -> vector<16x128xf32>
    %c0_3 = arith.constant 0 : index
    %c0_4 = arith.constant 0 : index
    %3 = vector.load %arg3[%c0_3, %c0_4] : memref<1x128xf32, #tpu.memory_space<vmem>>, vector<1x128xf32>
    %4 = vector.broadcast %3 : vector<1x128xf32> to vector<16x128xf32>
    %5 = arith.addf %2, %4 : vector<16x128xf32>
    %6 = arith.truncf %5 : vector<16x128xf32> to vector<16x128xbf16>
    %c0_5 = arith.constant 0 : index
    %c0_6 = arith.constant 0 : index
    %7 = vector.load %arg6[%c0_5, %c0_6] : memref<128x256xbf16, #tpu.memory_space<vmem>>, vector<128x256xbf16>
    %cst_7 = arith.constant dense<0.000000e+00> : vector<16x256xf32>
    %8 = tpu.matmul %6, %7, %cst_7 {dimension_numbers = #tpu.dot_dimension_numbers<[1], [0], [0], [1], [0, 0, 1, 1], [], []>} : vector<16x128xbf16>, vector<128x256xbf16>, vector<16x256xf32> -> vector<16x256xf32>
    %c0_8 = arith.constant 0 : index
    %c0_9 = arith.constant 0 : index
    %9 = vector.load %arg7[%c0_8, %c0_9] : memref<1x256xf32, #tpu.memory_space<vmem>>, vector<1x256xf32>
    %10 = vector.broadcast %9 : vector<1x256xf32> to vector<16x256xf32>
    %11 = arith.addf %8, %10 : vector<16x256xf32>
    %12 = arith.mulf %11, %11 : vector<16x256xf32>
    %cst_10 = arith.constant dense<0.000000e+00> : vector<16xf32>
    %13 = vector.multi_reduction <add>, %12, %cst_10 [1] : vector<16x256xf32> to vector<16xf32>
    %14 = vector.shape_cast %13 : vector<16xf32> to vector<16x1xf32>
    %cst_11 = arith.constant 9.99999996E-13 : f32
    %15 = vector.broadcast %cst_11 : f32 to vector<16x1xf32>
    %16 = arith.addf %14, %15 : vector<16x1xf32>
    %17 = math.rsqrt %16 : vector<16x1xf32>
    %18 = vector.broadcast %17 : vector<16x1xf32> to vector<16x256xf32>
    %19 = arith.mulf %11, %18 : vector<16x256xf32>
    %c0_12 = arith.constant 0 : index
    %c0_13 = arith.constant 0 : index
    %20 = vector.load %arg1[%c0_12, %c0_13] : memref<16x128xbf16, #tpu.memory_space<vmem>>, vector<16x128xbf16>
    %c0_14 = arith.constant 0 : index
    %c0_15 = arith.constant 0 : index
    %21 = vector.load %arg4[%c0_14, %c0_15] : memref<128x128xbf16, #tpu.memory_space<vmem>>, vector<128x128xbf16>
    %cst_16 = arith.constant dense<0.000000e+00> : vector<16x128xf32>
    %22 = tpu.matmul %20, %21, %cst_16 {dimension_numbers = #tpu.dot_dimension_numbers<[1], [0], [0], [1], [0, 0, 1, 1], [], []>} : vector<16x128xbf16>, vector<128x128xbf16>, vector<16x128xf32> -> vector<16x128xf32>
    %c0_17 = arith.constant 0 : index
    %c0_18 = arith.constant 0 : index
    %23 = vector.load %arg5[%c0_17, %c0_18] : memref<1x128xf32, #tpu.memory_space<vmem>>, vector<1x128xf32>
    %24 = vector.broadcast %23 : vector<1x128xf32> to vector<16x128xf32>
    %25 = arith.addf %22, %24 : vector<16x128xf32>
    %26 = arith.truncf %25 : vector<16x128xf32> to vector<16x128xbf16>
    %c0_19 = arith.constant 0 : index
    %c0_20 = arith.constant 0 : index
    %27 = vector.load %arg8[%c0_19, %c0_20] : memref<128x256xbf16, #tpu.memory_space<vmem>>, vector<128x256xbf16>
    %cst_21 = arith.constant dense<0.000000e+00> : vector<16x256xf32>
    %28 = tpu.matmul %26, %27, %cst_21 {dimension_numbers = #tpu.dot_dimension_numbers<[1], [0], [0], [1], [0, 0, 1, 1], [], []>} : vector<16x128xbf16>, vector<128x256xbf16>, vector<16x256xf32> -> vector<16x256xf32>
    %c0_22 = arith.constant 0 : index
    %c0_23 = arith.constant 0 : index
    %29 = vector.load %arg9[%c0_22, %c0_23] : memref<1x256xf32, #tpu.memory_space<vmem>>, vector<1x256xf32>
    %30 = vector.broadcast %29 : vector<1x256xf32> to vector<16x256xf32>
    %31 = arith.addf %28, %30 : vector<16x256xf32>
    %32 = arith.mulf %31, %31 : vector<16x256xf32>
    %cst_24 = arith.constant dense<0.000000e+00> : vector<16xf32>
    %33 = vector.multi_reduction <add>, %32, %cst_24 [1] : vector<16x256xf32> to vector<16xf32>
    %34 = vector.shape_cast %33 : vector<16xf32> to vector<16x1xf32>
    %cst_25 = arith.constant 9.99999996E-13 : f32
    %35 = vector.broadcast %cst_25 : f32 to vector<16x1xf32>
    %36 = arith.addf %34, %35 : vector<16x1xf32>
    %37 = math.rsqrt %36 : vector<16x1xf32>
    %38 = vector.broadcast %37 : vector<16x1xf32> to vector<16x256xf32>
    %39 = arith.mulf %31, %38 : vector<16x256xf32>
    %cst_26 = arith.constant dense<0.000000e+00> : vector<16x16xf32>
    %40 = tpu.matmul %19, %39, %cst_26 {dimension_numbers = #tpu.dot_dimension_numbers<[1], [1], [0], [0], [0, 0, 1, 0], [], []>} : vector<16x256xf32>, vector<16x256xf32>, vector<16x16xf32> -> vector<16x16xf32>
    %c0_27 = arith.constant 0 : index
    %c0_28 = arith.constant 0 : index
    %41 = vector.load %arg10[%c0_27, %c0_28] : memref<16x16xf32, #tpu.memory_space<vmem>>, vector<16x16xf32>
    tpu.vector_store %arg10[%c0_27, %c0_28], %40 {strides = array<i32>} : memref<16x16xf32, #tpu.memory_space<vmem>>, vector<16x16xf32>,
    %cst_29 = arith.constant dense<0.000000e+00> : vector<16x16xf32>
    %42 = tpu.matmul %39, %19, %cst_29 {dimension_numbers = #tpu.dot_dimension_numbers<[1], [1], [0], [0], [0, 0, 1, 0], [], []>} : vector<16x256xf32>, vector<16x256xf32>, vector<16x16xf32> -> vector<16x16xf32>
    %c0_30 = arith.constant 0 : index
    %c0_31 = arith.constant 0 : index
    %43 = vector.load %arg11[%c0_30, %c0_31] : memref<16x16xf32, #tpu.memory_space<vmem>>, vector<16x16xf32>
    tpu.vector_store %arg11[%c0_30, %c0_31], %42 {strides = array<i32>} : memref<16x16xf32, #tpu.memory_space<vmem>>, vector<16x16xf32>,
    %c0_32 = arith.constant 0 : index
    %c0_33 = arith.constant 0 : index
    %44 = vector.load %arg12[%c0_32, %c0_33] : memref<16x256xf32, #tpu.memory_space<vmem>>, vector<16x256xf32>
    tpu.vector_store %arg12[%c0_32, %c0_33], %19 {strides = array<i32>} : memref<16x256xf32, #tpu.memory_space<vmem>>, vector<16x256xf32>,
    %c0_34 = arith.constant 0 : index
    %c0_35 = arith.constant 0 : index
    %45 = vector.load %arg13[%c0_34, %c0_35] : memref<16x256xf32, #tpu.memory_space<vmem>>, vector<16x256xf32>
    tpu.vector_store %arg13[%c0_34, %c0_35], %39 {strides = array<i32>} : memref<16x256xf32, #tpu.memory_space<vmem>>, vector<16x256xf32>,
    return
  }
}

</mosaic_0001>

<llo_original>
// kernel: tpu_custom_call.1
$region0: #{tpu_custom_call.1}
  #allocation0 [shape = 'u32[]', space=smem, size = 0x4, offset = 0x4, fixed_abs, tag = 'smem constant byte address 0x4 - core index']
  #allocation1 [shape = 'u32[144,128]{1,0:T(1,128)}', space=vmem, size = 0x12000, scoped, tag = 'internal scratch']
  %s0 = inlined_call_operand.hbm [shape: bf16[16,1024], index: 0, kind: input, shape index: {}]
  %s1 = inlined_call_operand.hbm [shape: bf16[16,128], index: 1, kind: input, shape index: {}]
  %s2 = inlined_call_operand.hbm [shape: bf16[1024,128], index: 2, kind: input, shape index: {}]
  %s3 = inlined_call_operand.vmem [shape: f32[1,128], index: 3, kind: input, shape index: {}]
  %s4 = inlined_call_operand.hbm [shape: bf16[128,128], index: 4, kind: input, shape index: {}]
  %s5 = inlined_call_operand.vmem [shape: f32[1,128], index: 5, kind: input, shape index: {}]
  %s6 = inlined_call_operand.hbm [shape: bf16[128,256], index: 6, kind: input, shape index: {}]
  %s7 = inlined_call_operand.vmem [shape: f32[1,256], index: 7, kind: input, shape index: {}]
  %s8 = inlined_call_operand.hbm [shape: bf16[128,256], index: 8, kind: input, shape index: {}]
  %s9 = inlined_call_operand.vmem [shape: f32[1,256], index: 9, kind: input, shape index: {}]
  %s10 = inlined_call_operand.hbm [shape: f32[16,16], index: 10, kind: output, shape index: {0}]
  %s11 = inlined_call_operand.hbm [shape: f32[16,16], index: 11, kind: output, shape index: {1}]
  %s12 = inlined_call_operand.hbm [shape: f32[16,256], index: 12, kind: output, shape index: {2}]
  %s13 = inlined_call_operand.hbm [shape: f32[16,256], index: 13, kind: output, shape index: {3}]
  %14 = xla_tuple %s10, %s11, %s12, %s13
  %s15 = sld [smem:[#allocation0]]
  $region98: #{tpu_custom_call.1} parent=0
    _
  %s17 = ssub.s32 1, %s15
  %s18 = scalar_select 0, %s17, %s15
  $region1: #{tpu_custom_call.1} parent=0
    #allocation2 [shape = 'u8[32768]{0}', space=vmem, size = 0x8000, scoped, tag = 'input window, operand 0, single buffered']
    #allocation3 [shape = 's32[1]{0}', space=sflag, size = 0x4, scoped, tag = 'scoped memory for tpu_custom_call.1']
    #allocation4 [shape = 's32[1]{0}', space=sflag, size = 0x4, scoped, tag = 'scoped memory for tpu_custom_call.1']
    #allocation5 [shape = 'u8[4096]{0}', space=vmem, size = 0x1000, scoped, tag = 'input window, operand 1, single buffered']
    #allocation6 [shape = 's32[1]{0}', space=sflag, size = 0x4, scoped, tag = 'scoped memory for tpu_custom_call.1']
    #allocation7 [shape = 'u8[262144]{0}', space=vmem, size = 0x40000, scoped, tag = 'input window, operand 2, single buffered']
    #allocation8 [shape = 'u8[32768]{0}', space=vmem, size = 0x8000, scoped, tag = 'input window, operand 4, single buffered']
    #allocation9 [shape = 's32[1]{0}', space=sflag, size = 0x4, scoped, tag = 'scoped memory for tpu_custom_call.1']
    #allocation10 [shape = 'u8[65536]{0}', space=vmem, size = 0x10000, scoped, tag = 'input window, operand 6, single buffered']
    #allocation11 [shape = 'u8[65536]{0}', space=vmem, size = 0x10000, scoped, tag = 'input window, operand 8, single buffered']
    #allocation12 [shape = 's32[1]{0}', space=sflag, size = 0x4, scoped, tag = 'scoped memory for tpu_custom_call.1']
    #allocation13 [shape = 'u8[8192]{0}', space=vmem, size = 0x2000, scoped, tag = 'output window, operand 0, single buffered']
    #allocation14 [shape = 'u8[8192]{0}', space=vmem, size = 0x2000, scoped, tag = 'output window, operand 1, single buffered']
    #allocation15 [shape = 's32[1]{0}', space=sflag, size = 0x4, scoped, tag = 'scoped memory for tpu_custom_call.1']
    #allocation16 [shape = 'u8[16384]{0}', space=vmem, size = 0x4000, scoped, tag = 'output window, operand 2, single buffered']
    #allocation17 [shape = 'u8[16384]{0}', space=vmem, size = 0x4000, scoped, tag = 'output window, operand 3, single buffered']
    #allocation18 [shape = 's32[1]{0}', space=sflag, size = 0x4, scoped, tag = 'scoped memory for tpu_custom_call.1']
    %19 = vsyncpa [#allocation3], 0
    %20 = vsyncpa [#allocation6], 0
    %21 = vsyncpa [#allocation9], 0
    %22 = vsyncpa [#allocation12], 0
    %23 = vsyncpa [#allocation4], 0
    %24 = vsyncpa [#allocation15], 0
    %25 = vsyncpa [#allocation18], 0
    // Predicated region
    $region2: #{tpu_custom_call.1} parent=1 // pred_check
      _
    $region3: #{tpu_custom_call.1} parent=1 // pred_check_branch
      %27 = sbr.rel (0) target = $region5
    $region4: #{tpu_custom_call.1} parent=1 // pred_region
      %s29 = ssub.s32 1024, 1024
      %30 = vsyncadd [#allocation3], %s29
      %s31 = sshll.u32 [#allocation2], 4
      %s32 = int_to_ptr.vmem [resolvable:$true] %s31
      %37 = dma.hbm_to_vmem [thread:$0]  %s0, 1024, %s32, [#allocation3], 512, 512, 32
    $region5: #{tpu_custom_call.1} parent=1 // pred_fallthru
      _
    // Predicated region
    $region6: #{tpu_custom_call.1} parent=1 // pred_check
      _
    $region7: #{tpu_custom_call.1} parent=1 // pred_check_branch
      %39 = sbr.rel (0) target = $region9
    $region8: #{tpu_custom_call.1} parent=1 // pred_region
      %s41 = ssub.s32 128, 128
      %42 = vsyncadd [#allocation6], %s41
      %s43 = sshll.u32 [#allocation5], 4
      %s44 = int_to_ptr.vmem [resolvable:$true] %s43
      %49 = dma.hbm_to_vmem [thread:$0]  %s1, 128, %s44, [#allocation6], 64, 64, 4
    $region9: #{tpu_custom_call.1} parent=1 // pred_fallthru
      _
    // Predicated region
    $region10: #{tpu_custom_call.1} parent=1 // pred_check
      _
    $region11: #{tpu_custom_call.1} parent=1 // pred_check_branch
      %51 = sbr.rel (0) target = $region13
    $region12: #{tpu_custom_call.1} parent=1 // pred_region
      %s53 = ssub.s32 8192, 8192
      %54 = vsyncadd [#allocation6], %s53
      %s55 = sshll.u32 [#allocation7], 4
      %s56 = int_to_ptr.vmem [resolvable:$true] %s55
      %61 = dma.hbm_to_vmem [thread:$0]  %s2, 8192, %s56, [#allocation6], 64, 64, 4
    $region13: #{tpu_custom_call.1} parent=1 // pred_fallthru
      _
    // Predicated region
    $region14: #{tpu_custom_call.1} parent=1 // pred_check
      _
    $region15: #{tpu_custom_call.1} parent=1 // pred_check_branch
      %63 = sbr.rel (0) target = $region17
    $region16: #{tpu_custom_call.1} parent=1 // pred_region
      _
    $region17: #{tpu_custom_call.1} parent=1 // pred_fallthru
      _
    // Predicated region
    $region18: #{tpu_custom_call.1} parent=1 // pred_check
      _
    $region19: #{tpu_custom_call.1} parent=1 // pred_check_branch
      %65 = sbr.rel (0) target = $region21
    $region20: #{tpu_custom_call.1} parent=1 // pred_region
      %s67 = ssub.s32 1024, 1024
      %68 = vsyncadd [#allocation9], %s67
      %s69 = sshll.u32 [#allocation8], 4
      %s70 = int_to_ptr.vmem [resolvable:$true] %s69
      %75 = dma.hbm_to_vmem [thread:$0]  %s4, 1024, %s70, [#allocation9], 64, 64, 4
    $region21: #{tpu_custom_call.1} parent=1 // pred_fallthru
      _
    // Predicated region
    $region22: #{tpu_custom_call.1} parent=1 // pred_check
      _
    $region23: #{tpu_custom_call.1} parent=1 // pred_check_branch
      %77 = sbr.rel (0) target = $region25
    $region24: #{tpu_custom_call.1} parent=1 // pred_region
      _
    $region25: #{tpu_custom_call.1} parent=1 // pred_fallthru
      _
    // Predicated region
    $region26: #{tpu_custom_call.1} parent=1 // pred_check
      _
    $region27: #{tpu_custom_call.1} parent=1 // pred_check_branch
      %79 = sbr.rel (0) target = $region29
    $region28: #{tpu_custom_call.1} parent=1 // pred_region
      %s81 = ssub.s32 2048, 2048
      %82 = vsyncadd [#allocation9], %s81
      %s83 = sshll.u32 [#allocation10], 4
      %s84 = int_to_ptr.vmem [resolvable:$true] %s83
      %89 = dma.hbm_to_vmem [thread:$0]  %s6, 2048, %s84, [#allocation9], 128, 128, 8
    $region29: #{tpu_custom_call.1} parent=1 // pred_fallthru
      _
    // Predicated region
    $region30: #{tpu_custom_call.1} parent=1 // pred_check
      _
    $region31: #{tpu_custom_call.1} parent=1 // pred_check_branch
      %91 = sbr.rel (0) target = $region33
    $region32: #{tpu_custom_call.1} parent=1 // pred_region
      _
    $region33: #{tpu_custom_call.1} parent=1 // pred_fallthru
      _
    // Predicated region
    $region34: #{tpu_custom_call.1} parent=1 // pred_check
      _
    $region35: #{tpu_custom_call.1} parent=1 // pred_check_branch
      %93 = sbr.rel (0) target = $region37
    $region36: #{tpu_custom_call.1} parent=1 // pred_region
      %s95 = ssub.s32 2048, 2048
      %96 = vsyncadd [#allocation12], %s95
      %s97 = sshll.u32 [#allocation11], 4
      %s98 = int_to_ptr.vmem [resolvable:$true] %s97
      %103 = dma.hbm_to_vmem [thread:$0]  %s8, 2048, %s98, [#allocation12], 128, 128, 8
    $region37: #{tpu_custom_call.1} parent=1 // pred_fallthru
      _
    // Predicated region
    $region38: #{tpu_custom_call.1} parent=1 // pred_check
      _
    $region39: #{tpu_custom_call.1} parent=1 // pred_check_branch
      %105 = sbr.rel (0) target = $region41
    $region40: #{tpu_custom_call.1} parent=1 // pred_region
      _
    $region41: #{tpu_custom_call.1} parent=1 // pred_fallthru
      _
    // Predicated region
    $region42: #{tpu_custom_call.1} parent=1 // pred_check
      _
    $region43: #{tpu_custom_call.1} parent=1 // pred_check_branch
      %107 = sbr.rel (0) target = $region45
    $region44: #{tpu_custom_call.1} parent=1 // pred_region
      %108 = dma.done [#allocation3], 1024
    $region45: #{tpu_custom_call.1} parent=1 // pred_fallthru
      _
    // Predicated region
    $region46: #{tpu_custom_call.1} parent=1 // pred_check
      _
    $region47: #{tpu_custom_call.1} parent=1 // pred_check_branch
      %110 = sbr.rel (0) target = $region49
    $region48: #{tpu_custom_call.1} parent=1 // pred_region
      %111 = dma.done [#allocation6], 128
    $region49: #{tpu_custom_call.1} parent=1 // pred_fallthru
      _
    // Predicated region
    $region50: #{tpu_custom_call.1} parent=1 // pred_check
      _
    $region51: #{tpu_custom_call.1} parent=1 // pred_check_branch
      %113 = sbr.rel (0) target = $region53
    $region52: #{tpu_custom_call.1} parent=1 // pred_region
      %114 = dma.done [#allocation6], 8192
    $region53: #{tpu_custom_call.1} parent=1 // pred_fallthru
      _
    // Predicated region
    $region54: #{tpu_custom_call.1} parent=1 // pred_check
      _
    $region55: #{tpu_custom_call.1} parent=1 // pred_check_branch
      %116 = sbr.rel (0) target = $region57
    $region56: #{tpu_custom_call.1} parent=1 // pred_region
      %117 = dma.done [#allocation9], 1024
    $region57: #{tpu_custom_call.1} parent=1 // pred_fallthru
      _
    // Predicated region
    $region58: #{tpu_custom_call.1} parent=1 // pred_check
      _
    $region59: #{tpu_custom_call.1} parent=1 // pred_check_branch
      %119 = sbr.rel (0) target = $region61
    $region60: #{tpu_custom_call.1} parent=1 // pred_region
      %120 = dma.done [#allocation9], 2048
    $region61: #{tpu_custom_call.1} parent=1 // pred_fallthru
      _
    // Predicated region
    $region62: #{tpu_custom_call.1} parent=1 // pred_check
      _
    $region63: #{tpu_custom_call.1} parent=1 // pred_check_branch
      %122 = sbr.rel (0) target = $region65
    $region64: #{tpu_custom_call.1} parent=1 // pred_region
      %123 = dma.done [#allocation12], 2048
    $region65: #{tpu_custom_call.1} parent=1 // pred_fallthru
      _
    %v125 = vld [vmem:[#allocation2] sm:$0xff]
    %v126 = vld [vmem:[#allocation2 + $0x8] sm:$0xff]
    %v127 = vld [vmem:[#allocation2 + $0x10] sm:$0xff]
    %v128 = vld [vmem:[#allocation2 + $0x18] sm:$0xff]
    %v129 = vld [vmem:[#allocation2 + $0x20] sm:$0xff]
    %v130 = vld [vmem:[#allocation2 + $0x28] sm:$0xff]
    %v131 = vld [vmem:[#allocation2 + $0x30] sm:$0xff]
    %v132 = vld [vmem:[#allocation2 + $0x38] sm:$0xff]
    %v133 = vld [vmem:[#allocation7] sm:$0xf]
    %v134 = vld [vmem:[#allocation7 + $0x4] sm:$0xf]
    %v135 = vld [vmem:[#allocation7 + $0x8] sm:$0xf]
    %v136 = vld [vmem:[#allocation7 + $0xc] sm:$0xf]
    %v137 = vld [vmem:[#allocation7 + $0x10] sm:$0xf]
    %v138 = vld [vmem:[#allocation7 + $0x14] sm:$0xf]
    %v139 = vld [vmem:[#allocation7 + $0x18] sm:$0xf]
    %v140 = vld [vmem:[#allocation7 + $0x1c] sm:$0xf]
    %v141 = vld [vmem:[#allocation7 + $0x20] sm:$0xf]
    %v142 = vld [vmem:[#allocation7 + $0x24] sm:$0xf]
    %v143 = vld [vmem:[#allocation7 + $0x28] sm:$0xf]
    %v144 = vld [vmem:[#allocation7 + $0x2c] sm:$0xf]
    %v145 = vld [vmem:[#allocation7 + $0x30] sm:$0xf]
    %v146 = vld [vmem:[#allocation7 + $0x34] sm:$0xf]
    %v147 = vld [vmem:[#allocation7 + $0x38] sm:$0xf]
    %v148 = vld [vmem:[#allocation7 + $0x3c] sm:$0xf]
    %v149 = vld [vmem:[#allocation7 + $0x40] sm:$0xf]
    %v150 = vld [vmem:[#allocation7 + $0x44] sm:$0xf]
    %v151 = vld [vmem:[#allocation7 + $0x48] sm:$0xf]
    %v152 = vld [vmem:[#allocation7 + $0x4c] sm:$0xf]
    %v153 = vld [vmem:[#allocation7 + $0x50] sm:$0xf]
    %v154 = vld [vmem:[#allocation7 + $0x54] sm:$0xf]
    %v155 = vld [vmem:[#allocation7 + $0x58] sm:$0xf]
    %v156 = vld [vmem:[#allocation7 + $0x5c] sm:$0xf]
    %v157 = vld [vmem:[#allocation7 + $0x60] sm:$0xf]
    %v158 = vld [vmem:[#allocation7 + $0x64] sm:$0xf]
    %v159 = vld [vmem:[#allocation7 + $0x68] sm:$0xf]
    %v160 = vld [vmem:[#allocation7 + $0x6c] sm:$0xf]
    %v161 = vld [vmem:[#allocation7 + $0x70] sm:$0xf]
    %v162 = vld [vmem:[#allocation7 + $0x74] sm:$0xf]
    %v163 = vld [vmem:[#allocation7 + $0x78] sm:$0xf]
    %v164 = vld [vmem:[#allocation7 + $0x7c] sm:$0xf]
    %v165 = vld [vmem:[#allocation7 + $0x80] sm:$0xf]
    %v166 = vld [vmem:[#allocation7 + $0x84] sm:$0xf]
    %v167 = vld [vmem:[#allocation7 + $0x88] sm:$0xf]
    %v168 = vld [vmem:[#allocation7 + $0x8c] sm:$0xf]
    %v169 = vld [vmem:[#allocation7 + $0x90] sm:$0xf]
    %v170 = vld [vmem:[#allocation7 + $0x94] sm:$0xf]
    %v171 = vld [vmem:[#allocation7 + $0x98] sm:$0xf]
    %v172 = vld [vmem:[#allocation7 + $0x9c] sm:$0xf]
    %v173 = vld [vmem:[#allocation7 + $0xa0] sm:$0xf]
    %v174 = vld [vmem:[#allocation7 + $0xa4] sm:$0xf]
    %v175 = vld [vmem:[#allocation7 + $0xa8] sm:$0xf]
    %v176 = vld [vmem:[#allocation7 + $0xac] sm:$0xf]
    %v177 = vld [vmem:[#allocation7 + $0xb0] sm:$0xf]
    %v178 = vld [vmem:[#allocation7 + $0xb4] sm:$0xf]
    %v179 = vld [vmem:[#allocation7 + $0xb8] sm:$0xf]
    %v180 = vld [vmem:[#allocation7 + $0xbc] sm:$0xf]
    %v181 = vld [vmem:[#allocation7 + $0xc0] sm:$0xf]
    %v182 = vld [vmem:[#allocation7 + $0xc4] sm:$0xf]
    %v183 = vld [vmem:[#allocation7 + $0xc8] sm:$0xf]
    %v184 = vld [vmem:[#allocation7 + $0xcc] sm:$0xf]
    %v185 = vld [vmem:[#allocation7 + $0xd0] sm:$0xf]
    %v186 = vld [vmem:[#allocation7 + $0xd4] sm:$0xf]
    %v187 = vld [vmem:[#allocation7 + $0xd8] sm:$0xf]
    %v188 = vld [vmem:[#allocation7 + $0xdc] sm:$0xf]
    %v189 = vld [vmem:[#allocation7 + $0xe0] sm:$0xf]
    %v190 = vld [vmem:[#allocation7 + $0xe4] sm:$0xf]
    %v191 = vld [vmem:[#allocation7 + $0xe8] sm:$0xf]
    %v192 = vld [vmem:[#allocation7 + $0xec] sm:$0xf]
    %v193 = vld [vmem:[#allocation7 + $0xf0] sm:$0xf]
    %v194 = vld [vmem:[#allocation7 + $0xf4] sm:$0xf]
    %v195 = vld [vmem:[#allocation7 + $0xf8] sm:$0xf]
    %v196 = vld [vmem:[#allocation7 + $0xfc] sm:$0xf]
    %v197 = vld [vmem:[#allocation7 + $0x100] sm:$0xf]
    %v198 = vld [vmem:[#allocation7 + $0x104] sm:$0xf]
    %v199 = vld [vmem:[#allocation7 + $0x108] sm:$0xf]
    %v200 = vld [vmem:[#allocation7 + $0x10c] sm:$0xf]
    %v201 = vld [vmem:[#allocation7 + $0x110] sm:$0xf]
    %v202 = vld [vmem:[#allocation7 + $0x114] sm:$0xf]
    %v203 = vld [vmem:[#allocation7 + $0x118] sm:$0xf]
    %v204 = vld [vmem:[#allocation7 + $0x11c] sm:$0xf]
    %v205 = vld [vmem:[#allocation7 + $0x120] sm:$0xf]
    %v206 = vld [vmem:[#allocation7 + $0x124] sm:$0xf]
    %v207 = vld [vmem:[#allocation7 + $0x128] sm:$0xf]
    %v208 = vld [vmem:[#allocation7 + $0x12c] sm:$0xf]
    %v209 = vld [vmem:[#allocation7 + $0x130] sm:$0xf]
    %v210 = vld [vmem:[#allocation7 + $0x134] sm:$0xf]
    %v211 = vld [vmem:[#allocation7 + $0x138] sm:$0xf]
    %v212 = vld [vmem:[#allocation7 + $0x13c] sm:$0xf]
    %v213 = vld [vmem:[#allocation7 + $0x140] sm:$0xf]
    %v214 = vld [vmem:[#allocation7 + $0x144] sm:$0xf]
    %v215 = vld [vmem:[#allocation7 + $0x148] sm:$0xf]
    %v216 = vld [vmem:[#allocation7 + $0x14c] sm:$0xf]
    %v217 = vld [vmem:[#allocation7 + $0x150] sm:$0xf]
    %v218 = vld [vmem:[#allocation7 + $0x154] sm:$0xf]
    %v219 = vld [vmem:[#allocation7 + $0x158] sm:$0xf]
    %v220 = vld [vmem:[#allocation7 + $0x15c] sm:$0xf]
    %v221 = vld [vmem:[#allocation7 + $0x160] sm:$0xf]
    %v222 = vld [vmem:[#allocation7 + $0x164] sm:$0xf]
    %v223 = vld [vmem:[#allocation7 + $0x168] sm:$0xf]
    %v224 = vld [vmem:[#allocation7 + $0x16c] sm:$0xf]
    %v225 = vld [vmem:[#allocation7 + $0x170] sm:$0xf]
    %v226 = vld [vmem:[#allocation7 + $0x174] sm:$0xf]
    %v227 = vld [vmem:[#allocation7 + $0x178] sm:$0xf]
    %v228 = vld [vmem:[#allocation7 + $0x17c] sm:$0xf]
    %v229 = vld [vmem:[#allocation7 + $0x180] sm:$0xf]
    %v230 = vld [vmem:[#allocation7 + $0x184] sm:$0xf]
    %v231 = vld [vmem:[#allocation7 + $0x188] sm:$0xf]
    %v232 = vld [vmem:[#allocation7 + $0x18c] sm:$0xf]
    %v233 = vld [vmem:[#allocation7 + $0x190] sm:$0xf]
    %v234 = vld [vmem:[#allocation7 + $0x194] sm:$0xf]
    %v235 = vld [vmem:[#allocation7 + $0x198] sm:$0xf]
    %v236 = vld [vmem:[#allocation7 + $0x19c] sm:$0xf]
    %v237 = vld [vmem:[#allocation7 + $0x1a0] sm:$0xf]
    %v238 = vld [vmem:[#allocation7 + $0x1a4] sm:$0xf]
    %v239 = vld [vmem:[#allocation7 + $0x1a8] sm:$0xf]
    %v240 = vld [vmem:[#allocation7 + $0x1ac] sm:$0xf]
    %v241 = vld [vmem:[#allocation7 + $0x1b0] sm:$0xf]
    %v242 = vld [vmem:[#allocation7 + $0x1b4] sm:$0xf]
    %v243 = vld [vmem:[#allocation7 + $0x1b8] sm:$0xf]
    %v244 = vld [vmem:[#allocation7 + $0x1bc] sm:$0xf]
    %v245 = vld [vmem:[#allocation7 + $0x1c0] sm:$0xf]
    %v246 = vld [vmem:[#allocation7 + $0x1c4] sm:$0xf]
    %v247 = vld [vmem:[#allocation7 + $0x1c8] sm:$0xf]
    %v248 = vld [vmem:[#allocation7 + $0x1cc] sm:$0xf]
    %v249 = vld [vmem:[#allocation7 + $0x1d0] sm:$0xf]
    %v250 = vld [vmem:[#allocation7 + $0x1d4] sm:$0xf]
    %v251 = vld [vmem:[#allocation7 + $0x1d8] sm:$0xf]
    %v252 = vld [vmem:[#allocation7 + $0x1dc] sm:$0xf]
    %v253 = vld [vmem:[#allocation7 + $0x1e0] sm:$0xf]
    %v254 = vld [vmem:[#allocation7 + $0x1e4] sm:$0xf]
    %v255 = vld [vmem:[#allocation7 + $0x1e8] sm:$0xf]
    %v256 = vld [vmem:[#allocation7 + $0x1ec] sm:$0xf]
    %v257 = vld [vmem:[#allocation7 + $0x1f0] sm:$0xf]
    %v258 = vld [vmem:[#allocation7 + $0x1f4] sm:$0xf]
    %v259 = vld [vmem:[#allocation7 + $0x1f8] sm:$0xf]
    %v260 = vld [vmem:[#allocation7 + $0x1fc] sm:$0xf]
    %v261 = vld [vmem:[%s3] sm:$0x1]
    %v263 = vlaneseq
    %v264 = vshrl.u32 %v263, 7
    %v265 = vsub.s32 0, %v264
    %v266 = vrot.slane %v261, %v265
    %v276 = vunpack.c.l.b16 %v125
    %v277 = vunpack.c.h.b16 %v125
    %v278 = vunpack.c.l.b16 %v126
    %v279 = vunpack.c.h.b16 %v126
    %v280 = vunpack.c.l.b16 %v127
    %v281 = vunpack.c.h.b16 %v127
    %v282 = vunpack.c.l.b16 %v128
    %v283 = vunpack.c.h.b16 %v128
    %v284 = vunpack.c.l.b16 %v129
    %v285 = vunpack.c.h.b16 %v129
    %v286 = vunpack.c.l.b16 %v130
    %v287 = vunpack.c.h.b16 %v130
    %v288 = vunpack.c.l.b16 %v131
    %v289 = vunpack.c.h.b16 %v131
    %v290 = vunpack.c.l.b16 %v132
    %v291 = vunpack.c.h.b16 %v132
    %v292 = vpack.c.b16 %v284, %v276
    %v293 = vpack.c.b16 %v285, %v277
    %v294 = vpack.c.b16 %v286, %v278
    %v295 = vpack.c.b16 %v287, %v279
    %v296 = vpack.c.b16 %v288, %v280
    %v297 = vpack.c.b16 %v289, %v281
    %v298 = vpack.c.b16 %v290, %v282
    %v299 = vpack.c.b16 %v291, %v283
    %v436 = vunpack.c.l.b16 %v133
    %v437 = vunpack.c.l.b16 %v134
    %v438 = vunpack.c.l.b16 %v135
    %v439 = vunpack.c.l.b16 %v136
    %v440 = vunpack.c.l.b16 %v137
    %v441 = vunpack.c.l.b16 %v138
    %v442 = vunpack.c.l.b16 %v139
    %v443 = vunpack.c.l.b16 %v140
    %v444 = vunpack.c.l.b16 %v141
    %v445 = vunpack.c.l.b16 %v142
    %v446 = vunpack.c.l.b16 %v143
    %v447 = vunpack.c.l.b16 %v144
    %v448 = vunpack.c.l.b16 %v145
    %v449 = vunpack.c.l.b16 %v146
    %v450 = vunpack.c.l.b16 %v147
    %v451 = vunpack.c.l.b16 %v148
    %v452 = vunpack.c.l.b16 %v149
    %v453 = vunpack.c.l.b16 %v150
    %v454 = vunpack.c.l.b16 %v151
    %v455 = vunpack.c.l.b16 %v152
    %v456 = vunpack.c.l.b16 %v153
    %v457 = vunpack.c.l.b16 %v154
    %v458 = vunpack.c.l.b16 %v155
    %v459 = vunpack.c.l.b16 %v156
    %v460 = vunpack.c.l.b16 %v157
    %v461 = vunpack.c.l.b16 %v158
    %v462 = vunpack.c.l.b16 %v159
    %v463 = vunpack.c.l.b16 %v160
    %v464 = vunpack.c.l.b16 %v161
    %v465 = vunpack.c.l.b16 %v162
    %v466 = vunpack.c.l.b16 %v163
    %v467 = vunpack.c.l.b16 %v164
    %v468 = vunpack.c.l.b16 %v165
    %v469 = vunpack.c.l.b16 %v166
    %v470 = vunpack.c.l.b16 %v167
    %v471 = vunpack.c.l.b16 %v168
    %v472 = vunpack.c.l.b16 %v169
    %v473 = vunpack.c.l.b16 %v170
    %v474 = vunpack.c.l.b16 %v171
    %v475 = vunpack.c.l.b16 %v172
    %v476 = vunpack.c.l.b16 %v173
    %v477 = vunpack.c.l.b16 %v174
    %v478 = vunpack.c.l.b16 %v175
    %v479 = vunpack.c.l.b16 %v176
    %v480 = vunpack.c.l.b16 %v177
    %v481 = vunpack.c.l.b16 %v178
    %v482 = vunpack.c.l.b16 %v179
    %v483 = vunpack.c.l.b16 %v180
    %v484 = vunpack.c.l.b16 %v181
    %v485 = vunpack.c.l.b16 %v182
    %v486 = vunpack.c.l.b16 %v183
    %v487 = vunpack.c.l.b16 %v184
    %v488 = vunpack.c.l.b16 %v185
    %v489 = vunpack.c.l.b16 %v186
    %v490 = vunpack.c.l.b16 %v187
    %v491 = vunpack.c.l.b16 %v188
    %v492 = vunpack.c.l.b16 %v189
    %v493 = vunpack.c.l.b16 %v190
    %v494 = vunpack.c.l.b16 %v191
    %v495 = vunpack.c.l.b16 %v192
    %v496 = vunpack.c.l.b16 %v193
    %v497 = vunpack.c.l.b16 %v194
    %v498 = vunpack.c.l.b16 %v195
    %v499 = vunpack.c.l.b16 %v196
    %v500 = vunpack.c.l.b16 %v197
    %v501 = vunpack.c.l.b16 %v198
    %v502 = vunpack.c.l.b16 %v199
    %v503 = vunpack.c.l.b16 %v200
    %v504 = vunpack.c.l.b16 %v201
    %v505 = vunpack.c.l.b16 %v202
    %v506 = vunpack.c.l.b16 %v203
    %v507 = vunpack.c.l.b16 %v204
    %v508 = vunpack.c.l.b16 %v205
    %v509 = vunpack.c.l.b16 %v206
    %v510 = vunpack.c.l.b16 %v207
    %v511 = vunpack.c.l.b16 %v208
    %v512 = vunpack.c.l.b16 %v209
    %v513 = vunpack.c.l.b16 %v210
    %v514 = vunpack.c.l.b16 %v211
    %v515 = vunpack.c.l.b16 %v212
    %v516 = vunpack.c.l.b16 %v213
    %v517 = vunpack.c.l.b16 %v214
    %v518 = vunpack.c.l.b16 %v215
    %v519 = vunpack.c.l.b16 %v216
    %v520 = vunpack.c.l.b16 %v217
    %v521 = vunpack.c.l.b16 %v218
    %v522 = vunpack.c.l.b16 %v219
    %v523 = vunpack.c.l.b16 %v220
    %v524 = vunpack.c.l.b16 %v221
    %v525 = vunpack.c.l.b16 %v222
    %v526 = vunpack.c.l.b16 %v223
    %v527 = vunpack.c.l.b16 %v224
    %v528 = vunpack.c.l.b16 %v225
    %v529 = vunpack.c.l.b16 %v226
    %v530 = vunpack.c.l.b16 %v227
    %v531 = vunpack.c.l.b16 %v228
    %v532 = vunpack.c.l.b16 %v229
    %v533 = vunpack.c.l.b16 %v230
    %v534 = vunpack.c.l.b16 %v231
    %v535 = vunpack.c.l.b16 %v232
    %v536 = vunpack.c.l.b16 %v233
    %v537 = vunpack.c.l.b16 %v234
    %v538 = vunpack.c.l.b16 %v235
    %v539 = vunpack.c.l.b16 %v236
    %v540 = vunpack.c.l.b16 %v237
    %v541 = vunpack.c.l.b16 %v238
    %v542 = vunpack.c.l.b16 %v239
    %v543 = vunpack.c.l.b16 %v240
    %v544 = vunpack.c.l.b16 %v241
    %v545 = vunpack.c.l.b16 %v242
    %v546 = vunpack.c.l.b16 %v243
    %v547 = vunpack.c.l.b16 %v244
    %v548 = vunpack.c.l.b16 %v245
    %v549 = vunpack.c.l.b16 %v246
    %v550 = vunpack.c.l.b16 %v247
    %v551 = vunpack.c.l.b16 %v248
    %v552 = vunpack.c.l.b16 %v249
    %v553 = vunpack.c.l.b16 %v250
    %v554 = vunpack.c.l.b16 %v251
    %v555 = vunpack.c.l.b16 %v252
    %v556 = vunpack.c.l.b16 %v253
    %v557 = vunpack.c.l.b16 %v254
    %v558 = vunpack.c.l.b16 %v255
    %v559 = vunpack.c.l.b16 %v256
    %v560 = vunpack.c.l.b16 %v257
    %v561 = vunpack.c.l.b16 %v258
    %v562 = vunpack.c.l.b16 %v259
    %v563 = vunpack.c.l.b16 %v260
    %v564 = vpack.c.b16 %v437, %v436
    %v565 = vpack.c.b16 %v439, %v438
    %v566 = vpack.c.b16 %v441, %v440
    %v567 = vpack.c.b16 %v443, %v442
    %v568 = vpack.c.b16 %v445, %v444
    %v569 = vpack.c.b16 %v447, %v446
    %v570 = vpack.c.b16 %v449, %v448
    %v571 = vpack.c.b16 %v451, %v450
    %v572 = vpack.c.b16 %v453, %v452
    %v573 = vpack.c.b16 %v455, %v454
    %v574 = vpack.c.b16 %v457, %v456
    %v575 = vpack.c.b16 %v459, %v458
    %v576 = vpack.c.b16 %v461, %v460
    %v577 = vpack.c.b16 %v463, %v462
    %v578 = vpack.c.b16 %v465, %v464
    %v579 = vpack.c.b16 %v467, %v466
    %v580 = vpack.c.b16 %v469, %v468
    %v581 = vpack.c.b16 %v471, %v470
    %v582 = vpack.c.b16 %v473, %v472
    %v583 = vpack.c.b16 %v475, %v474
    %v584 = vpack.c.b16 %v477, %v476
    %v585 = vpack.c.b16 %v479, %v478
    %v586 = vpack.c.b16 %v481, %v480
    %v587 = vpack.c.b16 %v483, %v482
    %v588 = vpack.c.b16 %v485, %v484
    %v589 = vpack.c.b16 %v487, %v486
    %v590 = vpack.c.b16 %v489, %v488
    %v591 = vpack.c.b16 %v491, %v490
    %v592 = vpack.c.b16 %v493, %v492
    %v593 = vpack.c.b16 %v495, %v494
    %v594 = vpack.c.b16 %v497, %v496
    %v595 = vpack.c.b16 %v499, %v498
    %v596 = vpack.c.b16 %v501, %v500
    %v597 = vpack.c.b16 %v503, %v502
    %v598 = vpack.c.b16 %v505, %v504
    %v599 = vpack.c.b16 %v507, %v506
    %v600 = vpack.c.b16 %v509, %v508
    %v601 = vpack.c.b16 %v511, %v510
    %v602 = vpack.c.b16 %v513, %v512
    %v603 = vpack.c.b16 %v515, %v514
    %v604 = vpack.c.b16 %v517, %v516
    %v605 = vpack.c.b16 %v519, %v518
    %v606 = vpack.c.b16 %v521, %v520
    %v607 = vpack.c.b16 %v523, %v522
    %v608 = vpack.c.b16 %v525, %v524
    %v609 = vpack.c.b16 %v527, %v526
    %v610 = vpack.c.b16 %v529, %v528
    %v611 = vpack.c.b16 %v531, %v530
    %v612 = vpack.c.b16 %v533, %v532
    %v613 = vpack.c.b16 %v535, %v534
    %v614 = vpack.c.b16 %v537, %v536
    %v615 = vpack.c.b16 %v539, %v538
    %v616 = vpack.c.b16 %v541, %v540
    %v617 = vpack.c.b16 %v543, %v542
    %v618 = vpack.c.b16 %v545, %v544
    %v619 = vpack.c.b16 %v547, %v546
    %v620 = vpack.c.b16 %v549, %v548
    %v621 = vpack.c.b16 %v551, %v550
    %v622 = vpack.c.b16 %v553, %v552
    %v623 = vpack.c.b16 %v555, %v554
    %v624 = vpack.c.b16 %v557, %v556
    %v625 = vpack.c.b16 %v559, %v558
    %v626 = vpack.c.b16 %v561, %v560
    %v627 = vpack.c.b16 %v563, %v562
    %692 = vmatprep.subr.bf16.mxu0 0
    %693 = vmatpush1.bf16.msra.mxu0 %v564
    %694 = vmatprep.subr.bf16.mxu0 0
    %695 = vmatpush1.bf16.msra.mxu0 %v565
    %696 = vmatprep.subr.bf16.mxu0 0
    %697 = vmatpush1.bf16.msra.mxu0 %v566
    %698 = vmatprep.subr.bf16.mxu0 0
    %699 = vmatpush1.bf16.msra.mxu0 %v567
    %700 = vmatprep.subr.bf16.mxu0 0
    %701 = vmatpush1.bf16.msra.mxu0 %v568
    %702 = vmatprep.subr.bf16.mxu0 0
    %703 = vmatpush1.bf16.msra.mxu0 %v569
    %704 = vmatprep.subr.bf16.mxu0 0
    %705 = vmatpush1.bf16.msra.mxu0 %v570
    %706 = vmatprep.subr.bf16.mxu0 0
    %707 = vmatpush1.bf16.msra.mxu0 %v571
    %708 = vmatprep.subr.bf16.mxu0 0
    %709 = vmatpush1.bf16.msra.mxu0 %v572
    %710 = vmatprep.subr.bf16.mxu0 0
    %711 = vmatpush1.bf16.msra.mxu0 %v573
    %712 = vmatprep.subr.bf16.mxu0 0
    %713 = vmatpush1.bf16.msra.mxu0 %v574
    %714 = vmatprep.subr.bf16.mxu0 0
    %715 = vmatpush1.bf16.msra.mxu0 %v575
    %716 = vmatprep.subr.bf16.mxu0 0
    %717 = vmatpush1.bf16.msra.mxu0 %v576
    %718 = vmatprep.subr.bf16.mxu0 0
    %719 = vmatpush1.bf16.msra.mxu0 %v577
    %720 = vmatprep.subr.bf16.mxu0 0
    %721 = vmatpush1.bf16.msra.mxu0 %v578
    %722 = vmatprep.subr.bf16.mxu0 0
    %723 = vmatpush1.bf16.msra.mxu0 %v579
    %724 = vmatprep.mubr.bf16.mxu0 %v293
    %725 = vmatmul.mubr.bf16.gmra.mrb[0].mxu0 %v292
    %v726 = vpop.f32.mrb[0].mxu0
    %v727 = vadd.f32 %v266, %v726
    %v728 = vpop.f32.mrb[0].mxu0
    %v729 = vpop.f32.mrb[0].mxu0
    %v730 = vadd.f32 %v266, %v729
    %v731 = vpop.f32.mrb[0].mxu0
    %732 = vdwg.mxu0
    %733 = vmatprep.subr.bf16.mxu0 0
    %734 = vmatpush1.bf16.msra.mxu0 %v580
    %735 = vmatprep.subr.bf16.mxu0 0
    %736 = vmatpush1.bf16.msra.mxu0 %v581
    %737 = vmatprep.subr.bf16.mxu0 0
    %738 = vmatpush1.bf16.msra.mxu0 %v582
    %739 = vmatprep.subr.bf16.mxu0 0
    %740 = vmatpush1.bf16.msra.mxu0 %v583
    %741 = vmatprep.subr.bf16.mxu0 0
    %742 = vmatpush1.bf16.msra.mxu0 %v584
    %743 = vmatprep.subr.bf16.mxu0 0
    %744 = vmatpush1.bf16.msra.mxu0 %v585
    %745 = vmatprep.subr.bf16.mxu0 0
    %746 = vmatpush1.bf16.msra.mxu0 %v586
    %747 = vmatprep.subr.bf16.mxu0 0
    %748 = vmatpush1.bf16.msra.mxu0 %v587
    %749 = vmatprep.subr.bf16.mxu0 0
    %750 = vmatpush1.bf16.msra.mxu0 %v588
    %751 = vmatprep.subr.bf16.mxu0 0
    %752 = vmatpush1.bf16.msra.mxu0 %v589
    %753 = vmatprep.subr.bf16.mxu0 0
    %754 = vmatpush1.bf16.msra.mxu0 %v590
    %755 = vmatprep.subr.bf16.mxu0 0
    %756 = vmatpush1.bf16.msra.mxu0 %v591
    %757 = vmatprep.subr.bf16.mxu0 0
    %758 = vmatpush1.bf16.msra.mxu0 %v592
    %759 = vmatprep.subr.bf16.mxu0 0
    %760 = vmatpush1.bf16.msra.mxu0 %v593
    %761 = vmatprep.subr.bf16.mxu0 0
    %762 = vmatpush1.bf16.msra.mxu0 %v594
    %763 = vmatprep.subr.bf16.mxu0 0
    %764 = vmatpush1.bf16.msra.mxu0 %v595
    %765 = vmatprep.mubr.bf16.mxu0 %v295
    %766 = vmatmul.mubr.bf16.gmra.mrb[0].mxu0 %v294
    %v767 = vpop.f32.mrb[0].mxu0
    %v768 = vadd.f32 %v727, %v767
    %v769 = vpop.f32.mrb[0].mxu0
    %v770 = vpop.f32.mrb[0].mxu0
    %v771 = vadd.f32 %v730, %v770
    %v772 = vpop.f32.mrb[0].mxu0
    %773 = vdwg.mxu0
    %774 = vmatprep.subr.bf16.mxu0 0
    %775 = vmatpush1.bf16.msra.mxu0 %v596
    %776 = vmatprep.subr.bf16.mxu0 0
    %777 = vmatpush1.bf16.msra.mxu0 %v597
    %778 = vmatprep.subr.bf16.mxu0 0
    %779 = vmatpush1.bf16.msra.mxu0 %v598
    %780 = vmatprep.subr.bf16.mxu0 0
    %781 = vmatpush1.bf16.msra.mxu0 %v599
    %782 = vmatprep.subr.bf16.mxu0 0
    %783 = vmatpush1.bf16.msra.mxu0 %v600
    %784 = vmatprep.subr.bf16.mxu0 0
    %785 = vmatpush1.bf16.msra.mxu0 %v601
    %786 = vmatprep.subr.bf16.mxu0 0
    %787 = vmatpush1.bf16.msra.mxu0 %v602
    %788 = vmatprep.subr.bf16.mxu0 0
    %789 = vmatpush1.bf16.msra.mxu0 %v603
    %790 = vmatprep.subr.bf16.mxu0 0
    %791 = vmatpush1.bf16.msra.mxu0 %v604
    %792 = vmatprep.subr.bf16.mxu0 0
    %793 = vmatpush1.bf16.msra.mxu0 %v605
    %794 = vmatprep.subr.bf16.mxu0 0
    %795 = vmatpush1.bf16.msra.mxu0 %v606
    %796 = vmatprep.subr.bf16.mxu0 0
    %797 = vmatpush1.bf16.msra.mxu0 %v607
    %798 = vmatprep.subr.bf16.mxu0 0
    %799 = vmatpush1.bf16.msra.mxu0 %v608
    %800 = vmatprep.subr.bf16.mxu0 0
    %801 = vmatpush1.bf16.msra.mxu0 %v609
    %802 = vmatprep.subr.bf16.mxu0 0
    %803 = vmatpush1.bf16.msra.mxu0 %v610
    %804 = vmatprep.subr.bf16.mxu0 0
    %805 = vmatpush1.bf16.msra.mxu0 %v611
    %806 = vmatprep.mubr.bf16.mxu0 %v297
    %807 = vmatmul.mubr.bf16.gmra.mrb[0].mxu0 %v296
    %v808 = vpop.f32.mrb[0].mxu0
    %v809 = vadd.f32 %v768, %v808
    %v810 = vpop.f32.mrb[0].mxu0
    %v811 = vpop.f32.mrb[0].mxu0
    %v812 = vadd.f32 %v771, %v811
    %v813 = vpop.f32.mrb[0].mxu0
    %814 = vdwg.mxu0
    %815 = vmatprep.subr.bf16.mxu0 0
    %816 = vmatpush1.bf16.msra.mxu0 %v612
    %817 = vmatprep.subr.bf16.mxu0 0
    %818 = vmatpush1.bf16.msra.mxu0 %v613
    %819 = vmatprep.subr.bf16.mxu0 0
    %820 = vmatpush1.bf16.msra.mxu0 %v614
    %821 = vmatprep.subr.bf16.mxu0 0
    %822 = vmatpush1.bf16.msra.mxu0 %v615
    %823 = vmatprep.subr.bf16.mxu0 0
    %824 = vmatpush1.bf16.msra.mxu0 %v616
    %825 = vmatprep.subr.bf16.mxu0 0
    %826 = vmatpush1.bf16.msra.mxu0 %v617
    %827 = vmatprep.subr.bf16.mxu0 0
    %828 = vmatpush1.bf16.msra.mxu0 %v618
    %829 = vmatprep.subr.bf16.mxu0 0
    %830 = vmatpush1.bf16.msra.mxu0 %v619
    %831 = vmatprep.subr.bf16.mxu0 0
    %832 = vmatpush1.bf16.msra.mxu0 %v620
    %833 = vmatprep.subr.bf16.mxu0 0
    %834 = vmatpush1.bf16.msra.mxu0 %v621
    %835 = vmatprep.subr.bf16.mxu0 0
    %836 = vmatpush1.bf16.msra.mxu0 %v622
    %837 = vmatprep.subr.bf16.mxu0 0
    %838 = vmatpush1.bf16.msra.mxu0 %v623
    %839 = vmatprep.subr.bf16.mxu0 0
    %840 = vmatpush1.bf16.msra.mxu0 %v624
    %841 = vmatprep.subr.bf16.mxu0 0
    %842 = vmatpush1.bf16.msra.mxu0 %v625
    %843 = vmatprep.subr.bf16.mxu0 0
    %844 = vmatpush1.bf16.msra.mxu0 %v626
    %845 = vmatprep.subr.bf16.mxu0 0
    %846 = vmatpush1.bf16.msra.mxu0 %v627
    %847 = vmatprep.mubr.bf16.mxu0 %v299
    %848 = vmatmul.mubr.bf16.gmra.mrb[0].mxu0 %v298
    %v849 = vpop.f32.mrb[0].mxu0
    %v850 = vadd.f32 %v809, %v849
    %v851 = vpop.f32.mrb[0].mxu0
    %v852 = vpop.f32.mrb[0].mxu0
    %v853 = vadd.f32 %v812, %v852
    %v854 = vpop.f32.mrb[0].mxu0
    %855 = vdwg.mxu0
    %v856 = vpack.c.bf16 %v853, %v850
    %v857 = vld [vmem:[#allocation10] sm:$0xff]
    %v858 = vld [vmem:[#allocation10 + $0x8] sm:$0xff]
    %v859 = vld [vmem:[#allocation10 + $0x10] sm:$0xff]
    %v860 = vld [vmem:[#allocation10 + $0x18] sm:$0xff]
    %v861 = vld [vmem:[#allocation10 + $0x20] sm:$0xff]
    %v862 = vld [vmem:[#allocation10 + $0x28] sm:$0xff]
    %v863 = vld [vmem:[#allocation10 + $0x30] sm:$0xff]
    %v864 = vld [vmem:[#allocation10 + $0x38] sm:$0xff]
    %v865 = vld [vmem:[#allocation10 + $0x40] sm:$0xff]
    %v866 = vld [vmem:[#allocation10 + $0x48] sm:$0xff]
    %v867 = vld [vmem:[#allocation10 + $0x50] sm:$0xff]
    %v868 = vld [vmem:[#allocation10 + $0x58] sm:$0xff]
    %v869 = vld [vmem:[#allocation10 + $0x60] sm:$0xff]
    %v870 = vld [vmem:[#allocation10 + $0x68] sm:$0xff]
    %v871 = vld [vmem:[#allocation10 + $0x70] sm:$0xff]
    %v872 = vld [vmem:[#allocation10 + $0x78] sm:$0xff]
    %v873 = vld [vmem:[%s7] sm:$0x3]
    %v875 = vlaneseq
    %v876 = vshrl.u32 %v875, 7
    %v877 = vsub.s32 0, %v876
    %v878 = vrot.slane %v873, %v877
    %v879 = vlaneseq
    %v880 = vshrl.u32 %v879, 7
    %v881 = vsub.s32 1, %v880
    %v882 = vrot.slane %v873, %v881
    %v901 = vunpack.c.l.b16 %v857
    %v902 = vunpack.c.h.b16 %v857
    %v903 = vunpack.c.l.b16 %v858
    %v904 = vunpack.c.h.b16 %v858
    %v905 = vunpack.c.l.b16 %v859
    %v906 = vunpack.c.h.b16 %v859
    %v907 = vunpack.c.l.b16 %v860
    %v908 = vunpack.c.h.b16 %v860
    %v909 = vunpack.c.l.b16 %v861
    %v910 = vunpack.c.h.b16 %v861
    %v911 = vunpack.c.l.b16 %v862
    %v912 = vunpack.c.h.b16 %v862
    %v913 = vunpack.c.l.b16 %v863
    %v914 = vunpack.c.h.b16 %v863
    %v915 = vunpack.c.l.b16 %v864
    %v916 = vunpack.c.h.b16 %v864
    %v917 = vunpack.c.l.b16 %v865
    %v918 = vunpack.c.h.b16 %v865
    %v919 = vunpack.c.l.b16 %v866
    %v920 = vunpack.c.h.b16 %v866
    %v921 = vunpack.c.l.b16 %v867
    %v922 = vunpack.c.h.b16 %v867
    %v923 = vunpack.c.l.b16 %v868
    %v924 = vunpack.c.h.b16 %v868
    %v925 = vunpack.c.l.b16 %v869
    %v926 = vunpack.c.h.b16 %v869
    %v927 = vunpack.c.l.b16 %v870
    %v928 = vunpack.c.h.b16 %v870
    %v929 = vunpack.c.l.b16 %v871
    %v930 = vunpack.c.h.b16 %v871
    %v931 = vunpack.c.l.b16 %v872
    %v932 = vunpack.c.h.b16 %v872
    %v933 = vpack.c.b16 %v903, %v901
    %v934 = vpack.c.b16 %v904, %v902
    %v935 = vpack.c.b16 %v907, %v905
    %v936 = vpack.c.b16 %v908, %v906
    %v937 = vpack.c.b16 %v911, %v909
    %v938 = vpack.c.b16 %v912, %v910
    %v939 = vpack.c.b16 %v915, %v913
    %v940 = vpack.c.b16 %v916, %v914
    %v941 = vpack.c.b16 %v919, %v917
    %v942 = vpack.c.b16 %v920, %v918
    %v943 = vpack.c.b16 %v923, %v921
    %v944 = vpack.c.b16 %v924, %v922
    %v945 = vpack.c.b16 %v927, %v925
    %v946 = vpack.c.b16 %v928, %v926
    %v947 = vpack.c.b16 %v931, %v929
    %v948 = vpack.c.b16 %v932, %v930
    %965 = vmatprep.subr.bf16.mxu0 %v934
    %966 = vmatpush1.bf16.msra.mxu0 %v933
    %967 = vmatprep.subr.bf16.mxu0 %v936
    %968 = vmatpush1.bf16.msra.mxu0 %v935
    %969 = vmatprep.subr.bf16.mxu0 %v938
    %970 = vmatpush1.bf16.msra.mxu0 %v937
    %971 = vmatprep.subr.bf16.mxu0 %v940
    %972 = vmatpush1.bf16.msra.mxu0 %v939
    %973 = vmatprep.subr.bf16.mxu0 %v942
    %974 = vmatpush1.bf16.msra.mxu0 %v941
    %975 = vmatprep.subr.bf16.mxu0 %v944
    %976 = vmatpush1.bf16.msra.mxu0 %v943
    %977 = vmatprep.subr.bf16.mxu0 %v946
    %978 = vmatpush1.bf16.msra.mxu0 %v945
    %979 = vmatprep.subr.bf16.mxu0 %v948
    %980 = vmatpush1.bf16.msra.mxu0 %v947
    %981 = vmatprep.subr.bf16.mxu0 0
    %982 = vmatpush1.bf16.msra.mxu0 0
    %983 = vmatprep.subr.bf16.mxu0 0
    %984 = vmatpush1.bf16.msra.mxu0 0
    %985 = vmatprep.subr.bf16.mxu0 0
    %986 = vmatpush1.bf16.msra.mxu0 0
    %987 = vmatprep.subr.bf16.mxu0 0
    %988 = vmatpush1.bf16.msra.mxu0 0
    %989 = vmatprep.subr.bf16.mxu0 0
    %990 = vmatpush1.bf16.msra.mxu0 0
    %991 = vmatprep.subr.bf16.mxu0 0
    %992 = vmatpush1.bf16.msra.mxu0 0
    %993 = vmatprep.subr.bf16.mxu0 0
    %994 = vmatpush1.bf16.msra.mxu0 0
    %995 = vmatprep.subr.bf16.mxu0 0
    %996 = vmatpush1.bf16.msra.mxu0 0
    %997 = vmatprep.mubr.bf16.mxu0 0
    %998 = vmatmul.mubr.bf16.gmra.mrb[0].mxu0 %v856
    %v999 = vpop.f32.mrb[0].mxu0
    %v1000 = vadd.f32 %v878, %v999
    %v1001 = vpop.f32.mrb[0].mxu0
    %v1002 = vadd.f32 %v882, %v1001
    %v1003 = vpop.f32.mrb[0].mxu0
    %v1004 = vadd.f32 %v878, %v1003
    %v1005 = vpop.f32.mrb[0].mxu0
    %v1006 = vadd.f32 %v882, %v1005
    %1007 = vdwg.mxu0
    %v1008 = vmul.f32 %v1000, %v1000
    %v1009 = vmul.f32 %v1002, %v1002
    %v1010 = vmul.f32 %v1004, %v1004
    %v1011 = vmul.f32 %v1006, %v1006
    %v1012 = vadd.f32 %v1008, %v1009
    %1013 = vadd.xlane.f32.xlu0 %v1012
    %v1014 = vpop.xlane.xlu0 %1013
    %v1015 = vadd.f32 %v1010, %v1011
    %1016 = vadd.xlane.f32.xlu0 %v1015
    %v1017 = vpop.xlane.xlu0 %1016
    %v1018 = vadd.f32 %v1014, 1e-12
    %v1019 = vadd.f32 %v1017, 1e-12
    %v1020 = vrsqrt.pop %v1018
    %v1021 = vrsqrt.pop %v1019
    %v1022 = vmul.f32 %v1000, %v1020
    %v1023 = vmul.f32 %v1002, %v1020
    %v1024 = vmul.f32 %v1004, %v1021
    %v1025 = vmul.f32 %v1006, %v1021
    %v1026 = vld [vmem:[#allocation5] sm:$0xf]
    %v1027 = vld [vmem:[#allocation5 + $0x4] sm:$0xf]
    %v1028 = vld [vmem:[#allocation8] sm:$0xf]
    %v1029 = vld [vmem:[#allocation8 + $0x4] sm:$0xf]
    %v1030 = vld [vmem:[#allocation8 + $0x8] sm:$0xf]
    %v1031 = vld [vmem:[#allocation8 + $0xc] sm:$0xf]
    %v1032 = vld [vmem:[#allocation8 + $0x10] sm:$0xf]
    %v1033 = vld [vmem:[#allocation8 + $0x14] sm:$0xf]
    %v1034 = vld [vmem:[#allocation8 + $0x18] sm:$0xf]
    %v1035 = vld [vmem:[#allocation8 + $0x1c] sm:$0xf]
    %v1036 = vld [vmem:[#allocation8 + $0x20] sm:$0xf]
    %v1037 = vld [vmem:[#allocation8 + $0x24] sm:$0xf]
    %v1038 = vld [vmem:[#allocation8 + $0x28] sm:$0xf]
    %v1039 = vld [vmem:[#allocation8 + $0x2c] sm:$0xf]
    %v1040 = vld [vmem:[#allocation8 + $0x30] sm:$0xf]
    %v1041 = vld [vmem:[#allocation8 + $0x34] sm:$0xf]
    %v1042 = vld [vmem:[#allocation8 + $0x38] sm:$0xf]
    %v1043 = vld [vmem:[#allocation8 + $0x3c] sm:$0xf]
    %v1044 = vld [vmem:[%s5] sm:$0x1]
    %v1046 = vlaneseq
    %v1047 = vshrl.u32 %v1046, 7
    %v1048 = vsub.s32 0, %v1047
    %v1049 = vrot.slane %v1044, %v1048
    %v1053 = vunpack.c.l.b16 %v1026
    %v1054 = vunpack.c.l.b16 %v1027
    %v1055 = vpack.c.b16 %v1054, %v1053
    %v1073 = vunpack.c.l.b16 %v1028
    %v1074 = vunpack.c.l.b16 %v1029
    %v1075 = vunpack.c.l.b16 %v1030
    %v1076 = vunpack.c.l.b16 %v1031
    %v1077 = vunpack.c.l.b16 %v1032
    %v1078 = vunpack.c.l.b16 %v1033
    %v1079 = vunpack.c.l.b16 %v1034
    %v1080 = vunpack.c.l.b16 %v1035
    %v1081 = vunpack.c.l.b16 %v1036
    %v1082 = vunpack.c.l.b16 %v1037
    %v1083 = vunpack.c.l.b16 %v1038
    %v1084 = vunpack.c.l.b16 %v1039
    %v1085 = vunpack.c.l.b16 %v1040
    %v1086 = vunpack.c.l.b16 %v1041
    %v1087 = vunpack.c.l.b16 %v1042
    %v1088 = vunpack.c.l.b16 %v1043
    %v1089 = vpack.c.b16 %v1074, %v1073
    %v1090 = vpack.c.b16 %v1076, %v1075
    %v1091 = vpack.c.b16 %v1078, %v1077
    %v1092 = vpack.c.b16 %v1080, %v1079
    %v1093 = vpack.c.b16 %v1082, %v1081
    %v1094 = vpack.c.b16 %v1084, %v1083
    %v1095 = vpack.c.b16 %v1086, %v1085
    %v1096 = vpack.c.b16 %v1088, %v1087
    %1105 = vmatprep.subr.bf16.mxu0 0
    %1106 = vmatpush1.bf16.msra.mxu0 %v1089
    %1107 = vmatprep.subr.bf16.mxu0 0
    %1108 = vmatpush1.bf16.msra.mxu0 %v1090
    %1109 = vmatprep.subr.bf16.mxu0 0
    %1110 = vmatpush1.bf16.msra.mxu0 %v1091
    %1111 = vmatprep.subr.bf16.mxu0 0
    %1112 = vmatpush1.bf16.msra.mxu0 %v1092
    %1113 = vmatprep.subr.bf16.mxu0 0
    %1114 = vmatpush1.bf16.msra.mxu0 %v1093
    %1115 = vmatprep.subr.bf16.mxu0 0
    %1116 = vmatpush1.bf16.msra.mxu0 %v1094
    %1117 = vmatprep.subr.bf16.mxu0 0
    %1118 = vmatpush1.bf16.msra.mxu0 %v1095
    %1119 = vmatprep.subr.bf16.mxu0 0
    %1120 = vmatpush1.bf16.msra.mxu0 %v1096
    %1121 = vmatprep.subr.bf16.mxu0 0
    %1122 = vmatpush1.bf16.msra.mxu0 0
    %1123 = vmatprep.subr.bf16.mxu0 0
    %1124 = vmatpush1.bf16.msra.mxu0 0
    %1125 = vmatprep.subr.bf16.mxu0 0
    %1126 = vmatpush1.bf16.msra.mxu0 0
    %1127 = vmatprep.subr.bf16.mxu0 0
    %1128 = vmatpush1.bf16.msra.mxu0 0
    %1129 = vmatprep.subr.bf16.mxu0 0
    %1130 = vmatpush1.bf16.msra.mxu0 0
    %1131 = vmatprep.subr.bf16.mxu0 0
    %1132 = vmatpush1.bf16.msra.mxu0 0
    %1133 = vmatprep.subr.bf16.mxu0 0
    %1134 = vmatpush1.bf16.msra.mxu0 0
    %1135 = vmatprep.subr.bf16.mxu0 0
    %1136 = vmatpush1.bf16.msra.mxu0 0
    %1137 = vmatprep.mubr.bf16.mxu0 0
    %1138 = vmatmul.mubr.bf16.gmra.mrb[0].mxu0 %v1055
    %v1139 = vpop.f32.mrb[0].mxu0
    %v1140 = vadd.f32 %v1049, %v1139
    %v1141 = vpop.f32.mrb[0].mxu0
    %v1142 = vpop.f32.mrb[0].mxu0
    %v1143 = vadd.f32 %v1049, %v1142
    %v1144 = vpop.f32.mrb[0].mxu0
    %1145 = vdwg.mxu0
    %v1146 = vpack.c.bf16 %v1143, %v1140
    %v1147 = vld [vmem:[#allocation11] sm:$0xff]
    %v1148 = vld [vmem:[#allocation11 + $0x8] sm:$0xff]
    %v1149 = vld [vmem:[#allocation11 + $0x10] sm:$0xff]
    %v1150 = vld [vmem:[#allocation11 + $0x18] sm:$0xff]
    %v1151 = vld [vmem:[#allocation11 + $0x20] sm:$0xff]
    %v1152 = vld [vmem:[#allocation11 + $0x28] sm:$0xff]
    %v1153 = vld [vmem:[#allocation11 + $0x30] sm:$0xff]
    %v1154 = vld [vmem:[#allocation11 + $0x38] sm:$0xff]
    %v1155 = vld [vmem:[#allocation11 + $0x40] sm:$0xff]
    %v1156 = vld [vmem:[#allocation11 + $0x48] sm:$0xff]
    %v1157 = vld [vmem:[#allocation11 + $0x50] sm:$0xff]
    %v1158 = vld [vmem:[#allocation11 + $0x58] sm:$0xff]
    %v1159 = vld [vmem:[#allocation11 + $0x60] sm:$0xff]
    %v1160 = vld [vmem:[#allocation11 + $0x68] sm:$0xff]
    %v1161 = vld [vmem:[#allocation11 + $0x70] sm:$0xff]
    %v1162 = vld [vmem:[#allocation11 + $0x78] sm:$0xff]
    %v1163 = vld [vmem:[%s9] sm:$0x3]
    %v1165 = vlaneseq
    %v1166 = vshrl.u32 %v1165, 7
    %v1167 = vsub.s32 0, %v1166
    %v1168 = vrot.slane %v1163, %v1167
    %v1169 = vlaneseq
    %v1170 = vshrl.u32 %v1169, 7
    %v1171 = vsub.s32 1, %v1170
    %v1172 = vrot.slane %v1163, %v1171
    %v1191 = vunpack.c.l.b16 %v1147
    %v1192 = vunpack.c.h.b16 %v1147
    %v1193 = vunpack.c.l.b16 %v1148
    %v1194 = vunpack.c.h.b16 %v1148
    %v1195 = vunpack.c.l.b16 %v1149
    %v1196 = vunpack.c.h.b16 %v1149
    %v1197 = vunpack.c.l.b16 %v1150
    %v1198 = vunpack.c.h.b16 %v1150
    %v1199 = vunpack.c.l.b16 %v1151
    %v1200 = vunpack.c.h.b16 %v1151
    %v1201 = vunpack.c.l.b16 %v1152
    %v1202 = vunpack.c.h.b16 %v1152
    %v1203 = vunpack.c.l.b16 %v1153
    %v1204 = vunpack.c.h.b16 %v1153
    %v1205 = vunpack.c.l.b16 %v1154
    %v1206 = vunpack.c.h.b16 %v1154
    %v1207 = vunpack.c.l.b16 %v1155
    %v1208 = vunpack.c.h.b16 %v1155
    %v1209 = vunpack.c.l.b16 %v1156
    %v1210 = vunpack.c.h.b16 %v1156
    %v1211 = vunpack.c.l.b16 %v1157
    %v1212 = vunpack.c.h.b16 %v1157
    %v1213 = vunpack.c.l.b16 %v1158
    %v1214 = vunpack.c.h.b16 %v1158
    %v1215 = vunpack.c.l.b16 %v1159
    %v1216 = vunpack.c.h.b16 %v1159
    %v1217 = vunpack.c.l.b16 %v1160
    %v1218 = vunpack.c.h.b16 %v1160
    %v1219 = vunpack.c.l.b16 %v1161
    %v1220 = vunpack.c.h.b16 %v1161
    %v1221 = vunpack.c.l.b16 %v1162
    %v1222 = vunpack.c.h.b16 %v1162
    %v1223 = vpack.c.b16 %v1193, %v1191
    %v1224 = vpack.c.b16 %v1194, %v1192
    %v1225 = vpack.c.b16 %v1197, %v1195
    %v1226 = vpack.c.b16 %v1198, %v1196
    %v1227 = vpack.c.b16 %v1201, %v1199
    %v1228 = vpack.c.b16 %v1202, %v1200
    %v1229 = vpack.c.b16 %v1205, %v1203
    %v1230 = vpack.c.b16 %v1206, %v1204
    %v1231 = vpack.c.b16 %v1209, %v1207
    %v1232 = vpack.c.b16 %v1210, %v1208
    %v1233 = vpack.c.b16 %v1213, %v1211
    %v1234 = vpack.c.b16 %v1214, %v1212
    %v1235 = vpack.c.b16 %v1217, %v1215
    %v1236 = vpack.c.b16 %v1218, %v1216
    %v1237 = vpack.c.b16 %v1221, %v1219
    %v1238 = vpack.c.b16 %v1222, %v1220
    %1255 = vmatprep.subr.bf16.mxu0 %v1224
    %1256 = vmatpush1.bf16.msra.mxu0 %v1223
    %1257 = vmatprep.subr.bf16.mxu0 %v1226
    %1258 = vmatpush1.bf16.msra.mxu0 %v1225
    %1259 = vmatprep.subr.bf16.mxu0 %v1228
    %1260 = vmatpush1.bf16.msra.mxu0 %v1227
    %1261 = vmatprep.subr.bf16.mxu0 %v1230
    %1262 = vmatpush1.bf16.msra.mxu0 %v1229
    %1263 = vmatprep.subr.bf16.mxu0 %v1232
    %1264 = vmatpush1.bf16.msra.mxu0 %v1231
    %1265 = vmatprep.subr.bf16.mxu0 %v1234
    %1266 = vmatpush1.bf16.msra.mxu0 %v1233
    %1267 = vmatprep.subr.bf16.mxu0 %v1236
    %1268 = vmatpush1.bf16.msra.mxu0 %v1235
    %1269 = vmatprep.subr.bf16.mxu0 %v1238
    %1270 = vmatpush1.bf16.msra.mxu0 %v1237
    %1271 = vmatprep.subr.bf16.mxu0 0
    %1272 = vmatpush1.bf16.msra.mxu0 0
    %1273 = vmatprep.subr.bf16.mxu0 0
    %1274 = vmatpush1.bf16.msra.mxu0 0
    %1275 = vmatprep.subr.bf16.mxu0 0
    %1276 = vmatpush1.bf16.msra.mxu0 0
    %1277 = vmatprep.subr.bf16.mxu0 0
    %1278 = vmatpush1.bf16.msra.mxu0 0
    %1279 = vmatprep.subr.bf16.mxu0 0
    %1280 = vmatpush1.bf16.msra.mxu0 0
    %1281 = vmatprep.subr.bf16.mxu0 0
    %1282 = vmatpush1.bf16.msra.mxu0 0
    %1283 = vmatprep.subr.bf16.mxu0 0
    %1284 = vmatpush1.bf16.msra.mxu0 0
    %1285 = vmatprep.subr.bf16.mxu0 0
    %1286 = vmatpush1.bf16.msra.mxu0 0
    %1287 = vmatprep.mubr.bf16.mxu0 0
    %1288 = vmatmul.mubr.bf16.gmra.mrb[0].mxu0 %v1146
    %v1289 = vpop.f32.mrb[0].mxu0
    %v1290 = vadd.f32 %v1168, %v1289
    %v1291 = vpop.f32.mrb[0].mxu0
    %v1292 = vadd.f32 %v1172, %v1291
    %v1293 = vpop.f32.mrb[0].mxu0
    %v1294 = vadd.f32 %v1168, %v1293
    %v1295 = vpop.f32.mrb[0].mxu0
    %v1296 = vadd.f32 %v1172, %v1295
    %1297 = vdwg.mxu0
    %v1298 = vmul.f32 %v1290, %v1290
    %v1299 = vmul.f32 %v1292, %v1292
    %v1300 = vmul.f32 %v1294, %v1294
    %v1301 = vmul.f32 %v1296, %v1296
    %v1302 = vadd.f32 %v1298, %v1299
    %1303 = vadd.xlane.f32.xlu0 %v1302
    %v1304 = vpop.xlane.xlu0 %1303
    %v1305 = vadd.f32 %v1300, %v1301
    %1306 = vadd.xlane.f32.xlu0 %v1305
    %v1307 = vpop.xlane.xlu0 %1306
    %v1308 = vadd.f32 %v1304, 1e-12
    %v1309 = vadd.f32 %v1307, 1e-12
    %v1310 = vrsqrt.pop %v1308
    %v1311 = vrsqrt.pop %v1309
    %v1312 = vmul.f32 %v1290, %v1310
    %v1313 = vmul.f32 %v1292, %v1310
    %v1314 = vmul.f32 %v1294, %v1311
    %v1315 = vmul.f32 %v1296, %v1311
    %1316 = vmatprep.subr.mxu0 %v1313
    %1317 = vmatpush1.xpose.msra.mxu0 %v1312
    %1318 = vmatprep.subr.mxu0 %v1315
    %1319 = vmatpush1.xpose.msra.mxu0 %v1314
    %1320 = vmatprep.subr.mxu0 0.0
    %1321 = vmatpush1.xpose.msra.mxu0 0.0
    %1322 = vmatprep.subr.mxu0 0.0
    %1323 = vmatpush1.xpose.msra.mxu0 0.0
    %1324 = vmatprep.subr.mxu0 0.0
    %1325 = vmatpush1.xpose.msra.mxu0 0.0
    %1326 = vmatprep.subr.mxu0 0.0
    %1327 = vmatpush1.xpose.msra.mxu0 0.0
    %1328 = vmatprep.subr.mxu0 0.0
    %1329 = vmatpush1.xpose.msra.mxu0 0.0
    %1330 = vmatprep.subr.mxu0 0.0
    %1331 = vmatpush1.xpose.msra.mxu0 0.0
    %1332 = vmatprep.subr.mxu0 0.0
    %1333 = vmatpush1.xpose.msra.mxu0 0.0
    %1334 = vmatprep.subr.mxu0 0.0
    %1335 = vmatpush1.xpose.msra.mxu0 0.0
    %1336 = vmatprep.subr.mxu0 0.0
    %1337 = vmatpush1.xpose.msra.mxu0 0.0
    %1338 = vmatprep.subr.mxu0 0.0
    %1339 = vmatpush1.xpose.msra.mxu0 0.0
    %1340 = vmatprep.subr.mxu0 0.0
    %1341 = vmatpush1.xpose.msra.mxu0 0.0
    %1342 = vmatprep.subr.mxu0 0.0
    %1343 = vmatpush1.xpose.msra.mxu0 0.0
    %1344 = vmatprep.subr.mxu0 0.0
    %1345 = vmatpush1.xpose.msra.mxu0 0.0
    %1346 = vmatprep.subr.mxu0 0.0
    %1347 = vmatpush1.xpose.msra.mxu0 0.0
    %1348 = vmatprep.subr.mxu0 0.0
    %1349 = vmatpush1.xpose.msra.mxu0 0.0
    %1350 = vmatprep.subr.mxu0 0.0
    %1351 = vmatpush1.xpose.msra.mxu0 0.0
    %1352 = vmatprep.subr.mxu0 0.0
    %1353 = vmatpush1.xpose.msra.mxu0 0.0
    %1354 = vmatprep.subr.mxu0 0.0
    %1355 = vmatpush1.xpose.msra.mxu0 0.0
    %1356 = vmatprep.subr.mxu0 0.0
    %1357 = vmatpush1.xpose.msra.mxu0 0.0
    %1358 = vmatprep.subr.mxu0 0.0
    %1359 = vmatpush1.xpose.msra.mxu0 0.0
    %1360 = vmatprep.subr.mxu0 0.0
    %1361 = vmatpush1.xpose.msra.mxu0 0.0
    %1362 = vmatprep.subr.mxu0 0.0
    %1363 = vmatpush1.xpose.msra.mxu0 0.0
    %1364 = vmatprep.subr.mxu0 0.0
    %1365 = vmatpush1.xpose.msra.mxu0 0.0
    %1366 = vmatprep.subr.mxu0 0.0
    %1367 = vmatpush1.xpose.msra.mxu0 0.0
    %1368 = vmatprep.subr.mxu0 0.0
    %1369 = vmatpush1.xpose.msra.mxu0 0.0
    %1370 = vmatprep.subr.mxu0 0.0
    %1371 = vmatpush1.xpose.msra.mxu0 0.0
    %1372 = vmatprep.subr.mxu0 0.0
    %1373 = vmatpush1.xpose.msra.mxu0 0.0
    %1374 = vmatprep.subr.mxu0 0.0
    %1375 = vmatpush1.xpose.msra.mxu0 0.0
    %1376 = vmatprep.subr.mxu0 0.0
    %1377 = vmatpush1.xpose.msra.mxu0 0.0
    %1378 = vmatprep.subr.mxu0 0.0
    %1379 = vmatpush1.xpose.msra.mxu0 0.0
    %1380 = vmatprep.mubr.f32.mxu0 %v1023
    %1381 = vmatmul.mubr.f32.gmra.mrb[0].mxu0 %v1022
    %v1382 = vpop.f32.mrb[0].mxu0
    %v1383 = vadd.f32 0.0, %v1382
    %v1384 = vpop.f32.mrb[0].mxu0
    %1385 = vmatprep.mubr.f32.mxu0 %v1025
    %1386 = vmatmul.mubr.f32.gmra.mrb[0].mxu0 %v1024
    %v1387 = vpop.f32.mrb[0].mxu0
    %v1388 = vadd.f32 0.0, %v1387
    %v1389 = vpop.f32.mrb[0].mxu0
    %1390 = vdwg.mxu0
    %vm1391 = vcmask 130048
    %1392 = vst.msk [vmem:[#allocation13] sm:$0xff] %vm1391, %v1383
    %1393 = vst.msk [vmem:[#allocation13 + $0x8] sm:$0xff] %vm1391, %v1388
    %1394 = vmatprep.subr.mxu0 %v1023
    %1395 = vmatpush1.xpose.msra.mxu0 %v1022
    %1396 = vmatprep.subr.mxu0 %v1025
    %1397 = vmatpush1.xpose.msra.mxu0 %v1024
    %1398 = vmatprep.subr.mxu0 0.0
    %1399 = vmatpush1.xpose.msra.mxu0 0.0
    %1400 = vmatprep.subr.mxu0 0.0
    %1401 = vmatpush1.xpose.msra.mxu0 0.0
    %1402 = vmatprep.subr.mxu0 0.0
    %1403 = vmatpush1.xpose.msra.mxu0 0.0
    %1404 = vmatprep.subr.mxu0 0.0
    %1405 = vmatpush1.xpose.msra.mxu0 0.0
    %1406 = vmatprep.subr.mxu0 0.0
    %1407 = vmatpush1.xpose.msra.mxu0 0.0
    %1408 = vmatprep.subr.mxu0 0.0
    %1409 = vmatpush1.xpose.msra.mxu0 0.0
    %1410 = vmatprep.subr.mxu0 0.0
    %1411 = vmatpush1.xpose.msra.mxu0 0.0
    %1412 = vmatprep.subr.mxu0 0.0
    %1413 = vmatpush1.xpose.msra.mxu0 0.0
    %1414 = vmatprep.subr.mxu0 0.0
    %1415 = vmatpush1.xpose.msra.mxu0 0.0
    %1416 = vmatprep.subr.mxu0 0.0
    %1417 = vmatpush1.xpose.msra.mxu0 0.0
    %1418 = vmatprep.subr.mxu0 0.0
    %1419 = vmatpush1.xpose.msra.mxu0 0.0
    %1420 = vmatprep.subr.mxu0 0.0
    %1421 = vmatpush1.xpose.msra.mxu0 0.0
    %1422 = vmatprep.subr.mxu0 0.0
    %1423 = vmatpush1.xpose.msra.mxu0 0.0
    %1424 = vmatprep.subr.mxu0 0.0
    %1425 = vmatpush1.xpose.msra.mxu0 0.0
    %1426 = vmatprep.subr.mxu0 0.0
    %1427 = vmatpush1.xpose.msra.mxu0 0.0
    %1428 = vmatprep.subr.mxu0 0.0
    %1429 = vmatpush1.xpose.msra.mxu0 0.0
    %1430 = vmatprep.subr.mxu0 0.0
    %1431 = vmatpush1.xpose.msra.mxu0 0.0
    %1432 = vmatprep.subr.mxu0 0.0
    %1433 = vmatpush1.xpose.msra.mxu0 0.0
    %1434 = vmatprep.subr.mxu0 0.0
    %1435 = vmatpush1.xpose.msra.mxu0 0.0
    %1436 = vmatprep.subr.mxu0 0.0
    %1437 = vmatpush1.xpose.msra.mxu0 0.0
    %1438 = vmatprep.subr.mxu0 0.0
    %1439 = vmatpush1.xpose.msra.mxu0 0.0
    %1440 = vmatprep.subr.mxu0 0.0
    %1441 = vmatpush1.xpose.msra.mxu0 0.0
    %1442 = vmatprep.subr.mxu0 0.0
    %1443 = vmatpush1.xpose.msra.mxu0 0.0
    %1444 = vmatprep.subr.mxu0 0.0
    %1445 = vmatpush1.xpose.msra.mxu0 0.0
    %1446 = vmatprep.subr.mxu0 0.0
    %1447 = vmatpush1.xpose.msra.mxu0 0.0
    %1448 = vmatprep.subr.mxu0 0.0
    %1449 = vmatpush1.xpose.msra.mxu0 0.0
    %1450 = vmatprep.subr.mxu0 0.0
    %1451 = vmatpush1.xpose.msra.mxu0 0.0
    %1452 = vmatprep.subr.mxu0 0.0
    %1453 = vmatpush1.xpose.msra.mxu0 0.0
    %1454 = vmatprep.subr.mxu0 0.0
    %1455 = vmatpush1.xpose.msra.mxu0 0.0
    %1456 = vmatprep.subr.mxu0 0.0
    %1457 = vmatpush1.xpose.msra.mxu0 0.0
    %1458 = vmatprep.mubr.f32.mxu0 %v1313
    %1459 = vmatmul.mubr.f32.gmra.mrb[0].mxu0 %v1312
    %v1460 = vpop.f32.mrb[0].mxu0
    %v1461 = vadd.f32 0.0, %v1460
    %v1462 = vpop.f32.mrb[0].mxu0
    %1463 = vmatprep.mubr.f32.mxu0 %v1315
    %1464 = vmatmul.mubr.f32.gmra.mrb[0].mxu0 %v1314
    %v1465 = vpop.f32.mrb[0].mxu0
    %v1466 = vadd.f32 0.0, %v1465
    %v1467 = vpop.f32.mrb[0].mxu0
    %1468 = vdwg.mxu0
    %1469 = vst.msk [vmem:[#allocation14] sm:$0xff] %vm1391, %v1461
    %1470 = vst.msk [vmem:[#allocation14 + $0x8] sm:$0xff] %vm1391, %v1466
    %1471 = vst [vmem:[#allocation16] sm:$0xff] %v1022
    %1472 = vst [vmem:[#allocation16 + $0x8] sm:$0xff] %v1023
    %1473 = vst [vmem:[#allocation16 + $0x10] sm:$0xff] %v1024
    %1474 = vst [vmem:[#allocation16 + $0x18] sm:$0xff] %v1025
    %1475 = vst [vmem:[#allocation17] sm:$0xff] %v1312
    %1476 = vst [vmem:[#allocation17 + $0x8] sm:$0xff] %v1313
    %1477 = vst [vmem:[#allocation17 + $0x10] sm:$0xff] %v1314
    %1478 = vst [vmem:[#allocation17 + $0x18] sm:$0xff] %v1315
    // Predicated region
    $region66: #{tpu_custom_call.1} parent=1 // pred_check
      _
    $region67: #{tpu_custom_call.1} parent=1 // pred_check_branch
      %1480 = sbr.rel (0) target = $region69
    $region68: #{tpu_custom_call.1} parent=1 // pred_region
      %s1482 = ssub.s32 256, 256
      %1483 = vsyncadd [#allocation4], %s1482
      %s1484 = sshll.u32 [#allocation13], 4
      %s1485 = int_to_ptr.vmem [resolvable:$true] %s1484
      %1490 = dma.vmem_to_hbm [thread:$0]  %s1485, 256, %s10, [#allocation4], 128, 128, 8
    $region69: #{tpu_custom_call.1} parent=1 // pred_fallthru
      _
    // Predicated region
    $region70: #{tpu_custom_call.1} parent=1 // pred_check
      _
    $region71: #{tpu_custom_call.1} parent=1 // pred_check_branch
      %1492 = sbr.rel (0) target = $region73
    $region72: #{tpu_custom_call.1} parent=1 // pred_region
      %s1494 = ssub.s32 256, 256
      %1495 = vsyncadd [#allocation15], %s1494
      %s1496 = sshll.u32 [#allocation14], 4
      %s1497 = int_to_ptr.vmem [resolvable:$true] %s1496
      %1502 = dma.vmem_to_hbm [thread:$0]  %s1497, 256, %s11, [#allocation15], 128, 128, 8
    $region73: #{tpu_custom_call.1} parent=1 // pred_fallthru
      _
    // Predicated region
    $region74: #{tpu_custom_call.1} parent=1 // pred_check
      _
    $region75: #{tpu_custom_call.1} parent=1 // pred_check_branch
      %1504 = sbr.rel (0) target = $region77
    $region76: #{tpu_custom_call.1} parent=1 // pred_region
      %s1506 = ssub.s32 512, 512
      %1507 = vsyncadd [#allocation15], %s1506
      %s1508 = sshll.u32 [#allocation16], 4
      %s1509 = int_to_ptr.vmem [resolvable:$true] %s1508
      %1514 = dma.vmem_to_hbm [thread:$0]  %s1509, 512, %s12, [#allocation15], 256, 256, 16
    $region77: #{tpu_custom_call.1} parent=1 // pred_fallthru
      _
    // Predicated region
    $region78: #{tpu_custom_call.1} parent=1 // pred_check
      _
    $region79: #{tpu_custom_call.1} parent=1 // pred_check_branch
      %1516 = sbr.rel (0) target = $region81
    $region80: #{tpu_custom_call.1} parent=1 // pred_region
      %s1518 = ssub.s32 512, 512
      %1519 = vsyncadd [#allocation18], %s1518
      %s1520 = sshll.u32 [#allocation17], 4
      %s1521 = int_to_ptr.vmem [resolvable:$true] %s1520
      %1526 = dma.vmem_to_hbm [thread:$0]  %s1521, 512, %s13, [#allocation18], 256, 256, 16
    $region81: #{tpu_custom_call.1} parent=1 // pred_fallthru
      _
    // Predicated region
    $region82: #{tpu_custom_call.1} parent=1 // pred_check
      _
    $region83: #{tpu_custom_call.1} parent=1 // pred_check_branch
      %1528 = sbr.rel (0) target = $region85
    $region84: #{tpu_custom_call.1} parent=1 // pred_region
      %1529 = dma.done [#allocation4], 256
    $region85: #{tpu_custom_call.1} parent=1 // pred_fallthru
      _
    // Predicated region
    $region86: #{tpu_custom_call.1} parent=1 // pred_check
      _
    $region87: #{tpu_custom_call.1} parent=1 // pred_check_branch
      %1531 = sbr.rel (0) target = $region89
    $region88: #{tpu_custom_call.1} parent=1 // pred_region
      %1532 = dma.done [#allocation15], 256
    $region89: #{tpu_custom_call.1} parent=1 // pred_fallthru
      _
    // Predicated region
    $region90: #{tpu_custom_call.1} parent=1 // pred_check
      _
    $region91: #{tpu_custom_call.1} parent=1 // pred_check_branch
      %1534 = sbr.rel (0) target = $region93
    $region92: #{tpu_custom_call.1} parent=1 // pred_region
      %1535 = dma.done [#allocation15], 512
    $region93: #{tpu_custom_call.1} parent=1 // pred_fallthru
      _
    // Predicated region
    $region94: #{tpu_custom_call.1} parent=1 // pred_check
      _
    $region95: #{tpu_custom_call.1} parent=1 // pred_check_branch
      %1537 = sbr.rel (0) target = $region97
    $region96: #{tpu_custom_call.1} parent=1 // pred_region
      %1538 = dma.done [#allocation18], 512
    $region97: #{tpu_custom_call.1} parent=1 // pred_fallthru
      _
    %1539 = vsyncpa [#allocation3], 1
    %1540 = vsyncpa [#allocation6], 1
    %1541 = vsyncpa [#allocation9], 1
    %1542 = vsyncpa [#allocation12], 1
    %1543 = vsyncpa [#allocation4], 1
    %1544 = vsyncpa [#allocation15], 1
    %1545 = vsyncpa [#allocation18], 1

</llo_original>
